<compile_context>
chip_gen: v7x
topology: tpu7x:2x2x1
jax: 0.10.0
libtpu: 0.0.40
codegen_flags: <defaults>
</compile_context>

<pallas_src>
import numpy as np
import jax
import jax.numpy as jnp
from jax.experimental import pallas as pl
from jax.experimental.pallas import tpu as pltpu

KS = 7            # kernel_size
PAD = KS // 2     # padding = kernel_size // 2


def _round_up(v, m):
    return -(-v // m) * m


def _make_kernel(C, W, HW, L):
    """Kernel for static (C, W, HW); L = zero-tailed, 128-aligned slab length."""
    inv_c = 1.0 / C

    def kernel(x_ref, w_ref, m_ref, o_ref, sum_ref, max_ref):
        # x_ref:   (nb, ct, HW)  VMEM  current batch x channel tile
        # w_ref:   (2*KS*KS,)    SMEM  conv weight, OIHW flattened (avg ch first)
        # m_ref:   (KS, HW)      VMEM  per-kx column-validity masks (0/1)
        # o_ref:   (nb, HW)      VMEM  sigmoid(conv(...)), dense 2-D layout
        # sum_ref: (nb, L)       VMEM  running channel sum  (zero tail past HW)
        # max_ref: (nb, L)       VMEM  running channel max  (zero tail past HW)
        c_step = pl.program_id(1)
        last_c = pl.num_programs(1) - 1
        nb = x_ref.shape[0]

        x = x_ref[...].astype(jnp.float32)            # (nb, ct, HW)
        tile_sum = jnp.sum(x, axis=1)                 # (nb, HW)
        tile_max = jnp.max(x, axis=1)                 # (nb, HW)

        @pl.when(c_step == 0)
        def _init():
            # Zero tail so shifted windows that run past the top/bottom of the
            # image read zeros; only [:, :HW] is ever written afterwards.
            sum_ref[:, HW:] = jnp.zeros((nb, L - HW), jnp.float32)
            max_ref[:, HW:] = jnp.zeros((nb, L - HW), jnp.float32)
            sum_ref[:, :HW] = tile_sum
            max_ref[:, :HW] = tile_max

        @pl.when(c_step > 0)
        def _accumulate():
            sum_ref[:, :HW] = sum_ref[:, :HW] + tile_sum
            max_ref[:, :HW] = jnp.maximum(max_ref[:, :HW], tile_max)

        @pl.when(c_step == last_c)
        def _conv_and_store():
            pa = sum_ref[...] * inv_c                 # (nb, L) channel mean slab
            pm = max_ref[...]                         # (nb, L) channel max slab

            # Hoisted row shifts: one lane rotation per nonzero dy per slab
            # (12 rolls total), sliced back to the HW-wide image window.  At
            # the chosen nb these live slabs exceed the 64 vregs and stay in
            # VMEM; the block-size budget below accounts for them.
            rows_a, rows_m = {}, {}
            for ky in range(KS):
                dy = ky - PAD
                if dy == 0:
                    rows_a[ky] = pa[:, :HW]
                    rows_m[ky] = pm[:, :HW]
                else:
                    sh = (-dy * W) % L                # jnp.roll-style shift
                    rows_a[ky] = pltpu.roll(pa, sh, axis=1)[:, :HW]
                    rows_m[ky] = pltpu.roll(pm, sh, axis=1)[:, :HW]

            # Conv2d(2 -> 1, KSxKS, padding=PAD, bias=False):
            #   out[y,x] = sum_{ky,kx} w[c,ky,kx] * in[c, y+dy, x+dx]
            # Per kx: VPU FMAs over ky on the row-shifted slabs, then ONE
            # HW-wide column rotation; in-row wrap-around is killed by the 0/1
            # column-validity mask, row over/under-run by the zero tail.
            acc = None
            for kx in range(KS):
                dx = kx - PAD
                t = None
                for ky in range(KS):
                    wa = w_ref[ky * KS + kx]              # scalar (avg channel)
                    wm = w_ref[KS * KS + ky * KS + kx]    # scalar (max channel)
                    term = wa * rows_a[ky] + wm * rows_m[ky]
                    t = term if t is None else t + term
                if dx != 0:
                    t = pltpu.roll(t, (-dx) % HW, axis=1) * m_ref[kx:kx + 1, :]
                acc = t if acc is None else acc + t

            o_ref[...] = jax.nn.sigmoid(acc).astype(o_ref.dtype)

    return kernel


def spatial_attention(x, weight, *, images_per_block=None, channels_per_block=None):
    """x: (N, C, H, W); weight: (1, 2, KS, KS) OIHW conv weight. Returns (N, 1, H, W)."""
    N, C, H, W = x.shape
    HW = H * W
    # Slab length: room for the largest row shift, rounded to full lane width.
    L = _round_up(HW + PAD * W + PAD, 128)

    # ---- channel tile (trailing "arbitrary" grid axis) ----
    if channels_per_block is not None:
        ct = channels_per_block
    elif C <= 8 or C % 8 != 0:
        ct = C                                    # single channel step
    else:
        ct = 8
        for cand in (64, 32, 16, 8):
            if C % cand == 0:
                ct = cand
                break
    assert C % ct == 0, "channels_per_block must divide C"

    # ---- batch tile: sized by VMEM, not a fixed cap ----
    itemsize = jnp.dtype(x.dtype).itemsize
    if images_per_block is not None:
        nb = images_per_block
    elif N < 8:
        nb = N                                    # block == full batch (legal)
    else:
        # Per-image VMEM: double-buffered in/out blocks + two (nb, L) scratch
        # slabs + ~14 live row-shifted slabs.  ~12 MiB total fits the default
        # scoped-VMEM limit on v5e (16 MiB) and v6e/v7x (32 MiB).
        per_img = (2 * ct * HW + 2 * HW) * itemsize + (2 * L + 18 * HW) * 4
        nb = int(max(8, min(512, (12 << 20) // per_img)))
        nb -= nb % 8
        nb = min(nb, _round_up(N, 8))             # pad by at most one block
        if N > 8:                                 # keep >=2 steps for v7x's 2 TCs
            nb = min(nb, _round_up(-(-N // 2), 8))
    Np = _round_up(N, nb)
    assert nb == Np or nb % 8 == 0, "images_per_block must be a multiple of 8 or == N"

    x_flat = x.reshape(N, C, HW)                  # free, contiguous reshape
    if Np != N:                                   # pad awkward batch sizes
        x_flat = jnp.concatenate(
            [x_flat, jnp.zeros((Np - N, C, HW), x_flat.dtype)], axis=0)
    w_flat = weight.reshape(-1).astype(jnp.float32)          # (2*KS*KS,)

    # Per-kx column-validity masks (lane l -> pixel x = l % W; tap dx = kx-PAD
    # is valid iff 0 <= x+dx < W).  Passed as a kernel INPUT, not captured.
    col = np.arange(HW) % W
    col_mask = np.stack(
        [((col + (kx - PAD) >= 0) & (col + (kx - PAD) < W)).astype(np.float32)
         for kx in range(KS)])                    # (KS, HW)
    col_mask = jnp.asarray(col_mask)

    out = pl.pallas_call(
        _make_kernel(C, W, HW, L),
        out_shape=jax.ShapeDtypeStruct((Np, HW), x.dtype),
        grid=(Np // nb, C // ct),
        in_specs=[
            pl.BlockSpec((nb, ct, HW), lambda n, c: (n, c, 0)),
            pl.BlockSpec(memory_space=pltpu.MemorySpace.SMEM),
            pl.BlockSpec((KS, HW), lambda n, c: (0, 0)),
        ],
        out_specs=pl.BlockSpec((nb, HW), lambda n, c: (n, 0)),
        scratch_shapes=[
            pltpu.VMEM((nb, L), jnp.float32),     # running channel sum slab
            pltpu.VMEM((nb, L), jnp.float32),     # running channel max slab
        ],
        compiler_params=pltpu.CompilerParams(
            dimension_semantics=("parallel", "arbitrary")),
    )(x_flat, w_flat, col_mask)

    return out[:N].reshape(N, 1, H, W)


def reference(x, weight):
    avg_out = jnp.mean(x, axis=1, keepdims=True)
    max_out = jnp.max(x, axis=1, keepdims=True)
    feat = jnp.concatenate([avg_out, max_out], axis=1)
    y = jax.lax.conv_general_dilated(
        feat.astype(jnp.float32), weight.astype(jnp.float32),
        window_strides=(1, 1), padding=[(PAD, PAD), (PAD, PAD)],
        dimension_numbers=("NCHW", "OIHW", "NCHW"))
    return jax.nn.sigmoid(y).astype(x.dtype)


if __name__ == "__main__":
    key = jax.random.PRNGKey(0)
    key_x, key_w = jax.random.split(key)

    N, C, H, W = 2, 4, 16, 16
    x = jax.random.normal(key_x, (N, C, H, W), dtype=jnp.float32)

    # Deterministic conv weight init (PyTorch-style kaiming-uniform bound).
    fan_in = 2 * KS * KS
    bound = 1.0 / np.sqrt(fan_in)
    weight = jax.random.uniform(key_w, (1, 2, KS, KS), dtype=jnp.float32,
                                minval=-bound, maxval=bound)

    out = jax.block_until_ready(spatial_attention(x, weight))
    ref = jax.block_until_ready(reference(x, weight))

    assert out.shape == (N, 1, H, W)
    np.testing.assert_allclose(np.asarray(out), np.asarray(ref), rtol=1e-5, atol=1e-5)

    print("KERNEL_OK")
</pallas_src>

<mosaic_0001>
module attributes {stable_mosaic.version = 11 : i64} {
  func.func @kernel(%arg0: i32, %arg1: i32, %arg2: memref<2x4x256xf32, #tpu.memory_space<vmem>>, %arg3: memref<98xf32, #tpu.memory_space<smem>>, %arg4: memref<7x256xf32, #tpu.memory_space<vmem>>, %arg5: memref<2x256xf32, #tpu.memory_space<vmem>>, %arg6: memref<2x384xf32, #tpu.memory_space<vmem>>, %arg7: memref<2x384xf32, #tpu.memory_space<vmem>>) attributes {dimension_semantics = [#tpu.dimension_semantics<parallel>, #tpu.dimension_semantics<arbitrary>], iteration_bounds = array<i64: 1, 1>, scalar_prefetch = 0 : i64, scratch_operands = 2 : i64, tpu.core_type = #tpu.core_type<tc>, window_params = [{transform_indices = @transform_0, window_bounds = array<i64: 2, 4, 256>}, {transform_indices = @transform_1, window_bounds = array<i64: 98>}, {pipeline_mode = #tpu.pipeline_mode<synchronous>, transform_indices = @transform_2, window_bounds = array<i64: 7, 256>}, {transform_indices = @transform_3, window_bounds = array<i64: 2, 256>}]} {
    %c0 = arith.constant 0 : index
    %c0_0 = arith.constant 0 : index
    %c0_1 = arith.constant 0 : index
    %0 = vector.load %arg2[%c0, %c0_0, %c0_1] : memref<2x4x256xf32, #tpu.memory_space<vmem>>, vector<2x4x256xf32>
    %cst = arith.constant dense<0.000000e+00> : vector<2x256xf32>
    %1 = vector.multi_reduction <add>, %0, %cst [1] : vector<2x4x256xf32> to vector<2x256xf32>
    %cst_2 = arith.constant dense<0xFF800000> : vector<2x256xf32>
    %2 = vector.multi_reduction <maximumf>, %0, %cst_2 [1] : vector<2x4x256xf32> to vector<2x256xf32>
    %c0_i32 = arith.constant 0 : i32
    %3 = arith.cmpi eq, %arg1, %c0_i32 : i32
    %4 = arith.extui %3 : i1 to i32
    %c0_i32_3 = arith.constant 0 : i32
    %5 = arith.cmpi ne, %4, %c0_i32_3 : i32
    scf.if %5 {
      %cst_8 = arith.constant 0.000000e+00 : f32
      %12 = vector.broadcast %cst_8 : f32 to vector<2x128xf32>
      %c0_9 = arith.constant 0 : index
      %c256 = arith.constant 256 : index
      %13 = vector.load %arg6[%c0_9, %c256] : memref<2x384xf32, #tpu.memory_space<vmem>>, vector<2x128xf32>
      tpu.vector_store %arg6[%c0_9, %c256], %12 {strides = array<i32>} : memref<2x384xf32, #tpu.memory_space<vmem>>, vector<2x128xf32>,
      %cst_10 = arith.constant 0.000000e+00 : f32
      %14 = vector.broadcast %cst_10 : f32 to vector<2x128xf32>
      %c0_11 = arith.constant 0 : index
      %c256_12 = arith.constant 256 : index
      %15 = vector.load %arg7[%c0_11, %c256_12] : memref<2x384xf32, #tpu.memory_space<vmem>>, vector<2x128xf32>
      tpu.vector_store %arg7[%c0_11, %c256_12], %14 {strides = array<i32>} : memref<2x384xf32, #tpu.memory_space<vmem>>, vector<2x128xf32>,
      %c0_13 = arith.constant 0 : index
      %c0_14 = arith.constant 0 : index
      %16 = vector.load %arg6[%c0_13, %c0_14] : memref<2x384xf32, #tpu.memory_space<vmem>>, vector<2x256xf32>
      tpu.vector_store %arg6[%c0_13, %c0_14], %1 {strides = array<i32>} : memref<2x384xf32, #tpu.memory_space<vmem>>, vector<2x256xf32>,
      %c0_15 = arith.constant 0 : index
      %c0_16 = arith.constant 0 : index
      %17 = vector.load %arg7[%c0_15, %c0_16] : memref<2x384xf32, #tpu.memory_space<vmem>>, vector<2x256xf32>
      tpu.vector_store %arg7[%c0_15, %c0_16], %2 {strides = array<i32>} : memref<2x384xf32, #tpu.memory_space<vmem>>, vector<2x256xf32>,
    } else {
    }
    %c0_i32_4 = arith.constant 0 : i32
    %6 = arith.cmpi sgt, %arg1, %c0_i32_4 : i32
    %7 = arith.extui %6 : i1 to i32
    %c0_i32_5 = arith.constant 0 : i32
    %8 = arith.cmpi ne, %7, %c0_i32_5 : i32
    scf.if %8 {
      %c0_8 = arith.constant 0 : index
      %c0_9 = arith.constant 0 : index
      %12 = vector.load %arg6[%c0_8, %c0_9] : memref<2x384xf32, #tpu.memory_space<vmem>>, vector<2x256xf32>
      %13 = arith.addf %12, %1 : vector<2x256xf32>
      %c0_10 = arith.constant 0 : index
      %c0_11 = arith.constant 0 : index
      %14 = vector.load %arg6[%c0_10, %c0_11] : memref<2x384xf32, #tpu.memory_space<vmem>>, vector<2x256xf32>
      tpu.vector_store %arg6[%c0_10, %c0_11], %13 {strides = array<i32>} : memref<2x384xf32, #tpu.memory_space<vmem>>, vector<2x256xf32>,
      %c0_12 = arith.constant 0 : index
      %c0_13 = arith.constant 0 : index
      %15 = vector.load %arg7[%c0_12, %c0_13] : memref<2x384xf32, #tpu.memory_space<vmem>>, vector<2x256xf32>
      %16 = arith.maximumf %15, %2 : vector<2x256xf32>
      %c0_14 = arith.constant 0 : index
      %c0_15 = arith.constant 0 : index
      %17 = vector.load %arg7[%c0_14, %c0_15] : memref<2x384xf32, #tpu.memory_space<vmem>>, vector<2x256xf32>
      tpu.vector_store %arg7[%c0_14, %c0_15], %16 {strides = array<i32>} : memref<2x384xf32, #tpu.memory_space<vmem>>, vector<2x256xf32>,
    } else {
    }
    %c0_i32_6 = arith.constant 0 : i32
    %9 = arith.cmpi eq, %arg1, %c0_i32_6 : i32
    %10 = arith.extui %9 : i1 to i32
    %c0_i32_7 = arith.constant 0 : i32
    %11 = arith.cmpi ne, %10, %c0_i32_7 : i32
    scf.if %11 {
      %c0_8 = arith.constant 0 : index
      %c0_9 = arith.constant 0 : index
      %12 = vector.load %arg6[%c0_8, %c0_9] : memref<2x384xf32, #tpu.memory_space<vmem>>, vector<2x384xf32>
      %cst_10 = arith.constant 2.500000e-01 : f32
      %13 = vector.broadcast %cst_10 : f32 to vector<2x384xf32>
      %14 = arith.mulf %12, %13 : vector<2x384xf32>
      %c0_11 = arith.constant 0 : index
      %c0_12 = arith.constant 0 : index
      %15 = vector.load %arg7[%c0_11, %c0_12] : memref<2x384xf32, #tpu.memory_space<vmem>>, vector<2x384xf32>
      %c48_i32 = arith.constant 48 : i32
      %16 = tpu.dynamic_rotate %14 by %c48_i32 dim 1 : vector<2x384xf32>, i32 -> vector<2x384xf32>
      %17 = vector.extract_strided_slice %16 {offsets = [0, 0], sizes = [2, 256], strides = [1, 1]} : vector<2x384xf32> to vector<2x256xf32>
      %c48_i32_13 = arith.constant 48 : i32
      %18 = tpu.dynamic_rotate %15 by %c48_i32_13 dim 1 : vector<2x384xf32>, i32 -> vector<2x384xf32>
      %19 = vector.extract_strided_slice %18 {offsets = [0, 0], sizes = [2, 256], strides = [1, 1]} : vector<2x384xf32> to vector<2x256xf32>
      %c32_i32 = arith.constant 32 : i32
      %20 = tpu.dynamic_rotate %14 by %c32_i32 dim 1 : vector<2x384xf32>, i32 -> vector<2x384xf32>
      %21 = vector.extract_strided_slice %20 {offsets = [0, 0], sizes = [2, 256], strides = [1, 1]} : vector<2x384xf32> to vector<2x256xf32>
      %c32_i32_14 = arith.constant 32 : i32
      %22 = tpu.dynamic_rotate %15 by %c32_i32_14 dim 1 : vector<2x384xf32>, i32 -> vector<2x384xf32>
      %23 = vector.extract_strided_slice %22 {offsets = [0, 0], sizes = [2, 256], strides = [1, 1]} : vector<2x384xf32> to vector<2x256xf32>
      %c16_i32 = arith.constant 16 : i32
      %24 = tpu.dynamic_rotate %14 by %c16_i32 dim 1 : vector<2x384xf32>, i32 -> vector<2x384xf32>
      %25 = vector.extract_strided_slice %24 {offsets = [0, 0], sizes = [2, 256], strides = [1, 1]} : vector<2x384xf32> to vector<2x256xf32>
      %c16_i32_15 = arith.constant 16 : i32
      %26 = tpu.dynamic_rotate %15 by %c16_i32_15 dim 1 : vector<2x384xf32>, i32 -> vector<2x384xf32>
      %27 = vector.extract_strided_slice %26 {offsets = [0, 0], sizes = [2, 256], strides = [1, 1]} : vector<2x384xf32> to vector<2x256xf32>
      %28 = vector.extract_strided_slice %14 {offsets = [0, 0], sizes = [2, 256], strides = [1, 1]} : vector<2x384xf32> to vector<2x256xf32>
      %29 = vector.extract_strided_slice %15 {offsets = [0, 0], sizes = [2, 256], strides = [1, 1]} : vector<2x384xf32> to vector<2x256xf32>
      %c368_i32 = arith.constant 368 : i32
      %30 = tpu.dynamic_rotate %14 by %c368_i32 dim 1 : vector<2x384xf32>, i32 -> vector<2x384xf32>
      %31 = vector.extract_strided_slice %30 {offsets = [0, 0], sizes = [2, 256], strides = [1, 1]} : vector<2x384xf32> to vector<2x256xf32>
      %c368_i32_16 = arith.constant 368 : i32
      %32 = tpu.dynamic_rotate %15 by %c368_i32_16 dim 1 : vector<2x384xf32>, i32 -> vector<2x384xf32>
      %33 = vector.extract_strided_slice %32 {offsets = [0, 0], sizes = [2, 256], strides = [1, 1]} : vector<2x384xf32> to vector<2x256xf32>
      %c352_i32 = arith.constant 352 : i32
      %34 = tpu.dynamic_rotate %14 by %c352_i32 dim 1 : vector<2x384xf32>, i32 -> vector<2x384xf32>
      %35 = vector.extract_strided_slice %34 {offsets = [0, 0], sizes = [2, 256], strides = [1, 1]} : vector<2x384xf32> to vector<2x256xf32>
      %c352_i32_17 = arith.constant 352 : i32
      %36 = tpu.dynamic_rotate %15 by %c352_i32_17 dim 1 : vector<2x384xf32>, i32 -> vector<2x384xf32>
      %37 = vector.extract_strided_slice %36 {offsets = [0, 0], sizes = [2, 256], strides = [1, 1]} : vector<2x384xf32> to vector<2x256xf32>
      %c336_i32 = arith.constant 336 : i32
      %38 = tpu.dynamic_rotate %14 by %c336_i32 dim 1 : vector<2x384xf32>, i32 -> vector<2x384xf32>
      %39 = vector.extract_strided_slice %38 {offsets = [0, 0], sizes = [2, 256], strides = [1, 1]} : vector<2x384xf32> to vector<2x256xf32>
      %c336_i32_18 = arith.constant 336 : i32
      %40 = tpu.dynamic_rotate %15 by %c336_i32_18 dim 1 : vector<2x384xf32>, i32 -> vector<2x384xf32>
      %41 = vector.extract_strided_slice %40 {offsets = [0, 0], sizes = [2, 256], strides = [1, 1]} : vector<2x384xf32> to vector<2x256xf32>
      %c0_19 = arith.constant 0 : index
      %42 = memref.load %arg3[%c0_19] : memref<98xf32, #tpu.memory_space<smem>>
      %c49 = arith.constant 49 : index
      %43 = memref.load %arg3[%c49] : memref<98xf32, #tpu.memory_space<smem>>
      %44 = vector.broadcast %42 : f32 to vector<2x256xf32>
      %45 = arith.mulf %44, %17 : vector<2x256xf32>
      %46 = vector.broadcast %43 : f32 to vector<2x256xf32>
      %47 = arith.mulf %46, %19 : vector<2x256xf32>
      %48 = arith.addf %45, %47 : vector<2x256xf32>
      %c7 = arith.constant 7 : index
      %49 = memref.load %arg3[%c7] : memref<98xf32, #tpu.memory_space<smem>>
      %c56 = arith.constant 56 : index
      %50 = memref.load %arg3[%c56] : memref<98xf32, #tpu.memory_space<smem>>
      %51 = vector.broadcast %49 : f32 to vector<2x256xf32>
      %52 = arith.mulf %51, %21 : vector<2x256xf32>
      %53 = vector.broadcast %50 : f32 to vector<2x256xf32>
      %54 = arith.mulf %53, %23 : vector<2x256xf32>
      %55 = arith.addf %52, %54 : vector<2x256xf32>
      %56 = arith.addf %48, %55 : vector<2x256xf32>
      %c14 = arith.constant 14 : index
      %57 = memref.load %arg3[%c14] : memref<98xf32, #tpu.memory_space<smem>>
      %c63 = arith.constant 63 : index
      %58 = memref.load %arg3[%c63] : memref<98xf32, #tpu.memory_space<smem>>
      %59 = vector.broadcast %57 : f32 to vector<2x256xf32>
      %60 = arith.mulf %59, %25 : vector<2x256xf32>
      %61 = vector.broadcast %58 : f32 to vector<2x256xf32>
      %62 = arith.mulf %61, %27 : vector<2x256xf32>
      %63 = arith.addf %60, %62 : vector<2x256xf32>
      %64 = arith.addf %56, %63 : vector<2x256xf32>
      %c21 = arith.constant 21 : index
      %65 = memref.load %arg3[%c21] : memref<98xf32, #tpu.memory_space<smem>>
      %c70 = arith.constant 70 : index
      %66 = memref.load %arg3[%c70] : memref<98xf32, #tpu.memory_space<smem>>
      %67 = vector.broadcast %65 : f32 to vector<2x256xf32>
      %68 = arith.mulf %67, %28 : vector<2x256xf32>
      %69 = vector.broadcast %66 : f32 to vector<2x256xf32>
      %70 = arith.mulf %69, %29 : vector<2x256xf32>
      %71 = arith.addf %68, %70 : vector<2x256xf32>
      %72 = arith.addf %64, %71 : vector<2x256xf32>
      %c28 = arith.constant 28 : index
      %73 = memref.load %arg3[%c28] : memref<98xf32, #tpu.memory_space<smem>>
      %c77 = arith.constant 77 : index
      %74 = memref.load %arg3[%c77] : memref<98xf32, #tpu.memory_space<smem>>
      %75 = vector.broadcast %73 : f32 to vector<2x256xf32>
      %76 = arith.mulf %75, %31 : vector<2x256xf32>
      %77 = vector.broadcast %74 : f32 to vector<2x256xf32>
      %78 = arith.mulf %77, %33 : vector<2x256xf32>
      %79 = arith.addf %76, %78 : vector<2x256xf32>
      %80 = arith.addf %72, %79 : vector<2x256xf32>
      %c35 = arith.constant 35 : index
      %81 = memref.load %arg3[%c35] : memref<98xf32, #tpu.memory_space<smem>>
      %c84 = arith.constant 84 : index
      %82 = memref.load %arg3[%c84] : memref<98xf32, #tpu.memory_space<smem>>
      %83 = vector.broadcast %81 : f32 to vector<2x256xf32>
      %84 = arith.mulf %83, %35 : vector<2x256xf32>
      %85 = vector.broadcast %82 : f32 to vector<2x256xf32>
      %86 = arith.mulf %85, %37 : vector<2x256xf32>
      %87 = arith.addf %84, %86 : vector<2x256xf32>
      %88 = arith.addf %80, %87 : vector<2x256xf32>
      %c42 = arith.constant 42 : index
      %89 = memref.load %arg3[%c42] : memref<98xf32, #tpu.memory_space<smem>>
      %c91 = arith.constant 91 : index
      %90 = memref.load %arg3[%c91] : memref<98xf32, #tpu.memory_space<smem>>
      %91 = vector.broadcast %89 : f32 to vector<2x256xf32>
      %92 = arith.mulf %91, %39 : vector<2x256xf32>
      %93 = vector.broadcast %90 : f32 to vector<2x256xf32>
      %94 = arith.mulf %93, %41 : vector<2x256xf32>
      %95 = arith.addf %92, %94 : vector<2x256xf32>
      %96 = arith.addf %88, %95 : vector<2x256xf32>
      %c3_i32 = arith.constant 3 : i32
      %97 = tpu.dynamic_rotate %96 by %c3_i32 dim 1 : vector<2x256xf32>, i32 -> vector<2x256xf32>
      %c0_20 = arith.constant 0 : index
      %c0_21 = arith.constant 0 : index
      %98 = vector.load %arg4[%c0_20, %c0_21] : memref<7x256xf32, #tpu.memory_space<vmem>>, vector<1x256xf32>
      %99 = vector.broadcast %98 : vector<1x256xf32> to vector<2x256xf32>
      %100 = arith.mulf %97, %99 : vector<2x256xf32>
      %c1 = arith.constant 1 : index
      %101 = memref.load %arg3[%c1] : memref<98xf32, #tpu.memory_space<smem>>
      %c50 = arith.constant 50 : index
      %102 = memref.load %arg3[%c50] : memref<98xf32, #tpu.memory_space<smem>>
      %103 = vector.broadcast %101 : f32 to vector<2x256xf32>
      %104 = arith.mulf %103, %17 : vector<2x256xf32>
      %105 = vector.broadcast %102 : f32 to vector<2x256xf32>
      %106 = arith.mulf %105, %19 : vector<2x256xf32>
      %107 = arith.addf %104, %106 : vector<2x256xf32>
      %c8 = arith.constant 8 : index
      %108 = memref.load %arg3[%c8] : memref<98xf32, #tpu.memory_space<smem>>
      %c57 = arith.constant 57 : index
      %109 = memref.load %arg3[%c57] : memref<98xf32, #tpu.memory_space<smem>>
      %110 = vector.broadcast %108 : f32 to vector<2x256xf32>
      %111 = arith.mulf %110, %21 : vector<2x256xf32>
      %112 = vector.broadcast %109 : f32 to vector<2x256xf32>
      %113 = arith.mulf %112, %23 : vector<2x256xf32>
      %114 = arith.addf %111, %113 : vector<2x256xf32>
      %115 = arith.addf %107, %114 : vector<2x256xf32>
      %c15 = arith.constant 15 : index
      %116 = memref.load %arg3[%c15] : memref<98xf32, #tpu.memory_space<smem>>
      %c64 = arith.constant 64 : index
      %117 = memref.load %arg3[%c64] : memref<98xf32, #tpu.memory_space<smem>>
      %118 = vector.broadcast %116 : f32 to vector<2x256xf32>
      %119 = arith.mulf %118, %25 : vector<2x256xf32>
      %120 = vector.broadcast %117 : f32 to vector<2x256xf32>
      %121 = arith.mulf %120, %27 : vector<2x256xf32>
      %122 = arith.addf %119, %121 : vector<2x256xf32>
      %123 = arith.addf %115, %122 : vector<2x256xf32>
      %c22 = arith.constant 22 : index
      %124 = memref.load %arg3[%c22] : memref<98xf32, #tpu.memory_space<smem>>
      %c71 = arith.constant 71 : index
      %125 = memref.load %arg3[%c71] : memref<98xf32, #tpu.memory_space<smem>>
      %126 = vector.broadcast %124 : f32 to vector<2x256xf32>
      %127 = arith.mulf %126, %28 : vector<2x256xf32>
      %128 = vector.broadcast %125 : f32 to vector<2x256xf32>
      %129 = arith.mulf %128, %29 : vector<2x256xf32>
      %130 = arith.addf %127, %129 : vector<2x256xf32>
      %131 = arith.addf %123, %130 : vector<2x256xf32>
      %c29 = arith.constant 29 : index
      %132 = memref.load %arg3[%c29] : memref<98xf32, #tpu.memory_space<smem>>
      %c78 = arith.constant 78 : index
      %133 = memref.load %arg3[%c78] : memref<98xf32, #tpu.memory_space<smem>>
      %134 = vector.broadcast %132 : f32 to vector<2x256xf32>
      %135 = arith.mulf %134, %31 : vector<2x256xf32>
      %136 = vector.broadcast %133 : f32 to vector<2x256xf32>
      %137 = arith.mulf %136, %33 : vector<2x256xf32>
      %138 = arith.addf %135, %137 : vector<2x256xf32>
      %139 = arith.addf %131, %138 : vector<2x256xf32>
      %c36 = arith.constant 36 : index
      %140 = memref.load %arg3[%c36] : memref<98xf32, #tpu.memory_space<smem>>
      %c85 = arith.constant 85 : index
      %141 = memref.load %arg3[%c85] : memref<98xf32, #tpu.memory_space<smem>>
      %142 = vector.broadcast %140 : f32 to vector<2x256xf32>
      %143 = arith.mulf %142, %35 : vector<2x256xf32>
      %144 = vector.broadcast %141 : f32 to vector<2x256xf32>
      %145 = arith.mulf %144, %37 : vector<2x256xf32>
      %146 = arith.addf %143, %145 : vector<2x256xf32>
      %147 = arith.addf %139, %146 : vector<2x256xf32>
      %c43 = arith.constant 43 : index
      %148 = memref.load %arg3[%c43] : memref<98xf32, #tpu.memory_space<smem>>
      %c92 = arith.constant 92 : index
      %149 = memref.load %arg3[%c92] : memref<98xf32, #tpu.memory_space<smem>>
      %150 = vector.broadcast %148 : f32 to vector<2x256xf32>
      %151 = arith.mulf %150, %39 : vector<2x256xf32>
      %152 = vector.broadcast %149 : f32 to vector<2x256xf32>
      %153 = arith.mulf %152, %41 : vector<2x256xf32>
      %154 = arith.addf %151, %153 : vector<2x256xf32>
      %155 = arith.addf %147, %154 : vector<2x256xf32>
      %c2_i32 = arith.constant 2 : i32
      %156 = tpu.dynamic_rotate %155 by %c2_i32 dim 1 : vector<2x256xf32>, i32 -> vector<2x256xf32>
      %c1_22 = arith.constant 1 : index
      %c0_23 = arith.constant 0 : index
      %157 = vector.load %arg4[%c1_22, %c0_23] : memref<7x256xf32, #tpu.memory_space<vmem>>, vector<1x256xf32>
      %158 = vector.broadcast %157 : vector<1x256xf32> to vector<2x256xf32>
      %159 = arith.mulf %156, %158 : vector<2x256xf32>
      %160 = arith.addf %100, %159 : vector<2x256xf32>
      %c2 = arith.constant 2 : index
      %161 = memref.load %arg3[%c2] : memref<98xf32, #tpu.memory_space<smem>>
      %c51 = arith.constant 51 : index
      %162 = memref.load %arg3[%c51] : memref<98xf32, #tpu.memory_space<smem>>
      %163 = vector.broadcast %161 : f32 to vector<2x256xf32>
      %164 = arith.mulf %163, %17 : vector<2x256xf32>
      %165 = vector.broadcast %162 : f32 to vector<2x256xf32>
      %166 = arith.mulf %165, %19 : vector<2x256xf32>
      %167 = arith.addf %164, %166 : vector<2x256xf32>
      %c9 = arith.constant 9 : index
      %168 = memref.load %arg3[%c9] : memref<98xf32, #tpu.memory_space<smem>>
      %c58 = arith.constant 58 : index
      %169 = memref.load %arg3[%c58] : memref<98xf32, #tpu.memory_space<smem>>
      %170 = vector.broadcast %168 : f32 to vector<2x256xf32>
      %171 = arith.mulf %170, %21 : vector<2x256xf32>
      %172 = vector.broadcast %169 : f32 to vector<2x256xf32>
      %173 = arith.mulf %172, %23 : vector<2x256xf32>
      %174 = arith.addf %171, %173 : vector<2x256xf32>
      %175 = arith.addf %167, %174 : vector<2x256xf32>
      %c16 = arith.constant 16 : index
      %176 = memref.load %arg3[%c16] : memref<98xf32, #tpu.memory_space<smem>>
      %c65 = arith.constant 65 : index
      %177 = memref.load %arg3[%c65] : memref<98xf32, #tpu.memory_space<smem>>
      %178 = vector.broadcast %176 : f32 to vector<2x256xf32>
      %179 = arith.mulf %178, %25 : vector<2x256xf32>
      %180 = vector.broadcast %177 : f32 to vector<2x256xf32>
      %181 = arith.mulf %180, %27 : vector<2x256xf32>
      %182 = arith.addf %179, %181 : vector<2x256xf32>
      %183 = arith.addf %175, %182 : vector<2x256xf32>
      %c23 = arith.constant 23 : index
      %184 = memref.load %arg3[%c23] : memref<98xf32, #tpu.memory_space<smem>>
      %c72 = arith.constant 72 : index
      %185 = memref.load %arg3[%c72] : memref<98xf32, #tpu.memory_space<smem>>
      %186 = vector.broadcast %184 : f32 to vector<2x256xf32>
      %187 = arith.mulf %186, %28 : vector<2x256xf32>
      %188 = vector.broadcast %185 : f32 to vector<2x256xf32>
      %189 = arith.mulf %188, %29 : vector<2x256xf32>
      %190 = arith.addf %187, %189 : vector<2x256xf32>
      %191 = arith.addf %183, %190 : vector<2x256xf32>
      %c30 = arith.constant 30 : index
      %192 = memref.load %arg3[%c30] : memref<98xf32, #tpu.memory_space<smem>>
      %c79 = arith.constant 79 : index
      %193 = memref.load %arg3[%c79] : memref<98xf32, #tpu.memory_space<smem>>
      %194 = vector.broadcast %192 : f32 to vector<2x256xf32>
      %195 = arith.mulf %194, %31 : vector<2x256xf32>
      %196 = vector.broadcast %193 : f32 to vector<2x256xf32>
      %197 = arith.mulf %196, %33 : vector<2x256xf32>
      %198 = arith.addf %195, %197 : vector<2x256xf32>
      %199 = arith.addf %191, %198 : vector<2x256xf32>
      %c37 = arith.constant 37 : index
      %200 = memref.load %arg3[%c37] : memref<98xf32, #tpu.memory_space<smem>>
      %c86 = arith.constant 86 : index
      %201 = memref.load %arg3[%c86] : memref<98xf32, #tpu.memory_space<smem>>
      %202 = vector.broadcast %200 : f32 to vector<2x256xf32>
      %203 = arith.mulf %202, %35 : vector<2x256xf32>
      %204 = vector.broadcast %201 : f32 to vector<2x256xf32>
      %205 = arith.mulf %204, %37 : vector<2x256xf32>
      %206 = arith.addf %203, %205 : vector<2x256xf32>
      %207 = arith.addf %199, %206 : vector<2x256xf32>
      %c44 = arith.constant 44 : index
      %208 = memref.load %arg3[%c44] : memref<98xf32, #tpu.memory_space<smem>>
      %c93 = arith.constant 93 : index
      %209 = memref.load %arg3[%c93] : memref<98xf32, #tpu.memory_space<smem>>
      %210 = vector.broadcast %208 : f32 to vector<2x256xf32>
      %211 = arith.mulf %210, %39 : vector<2x256xf32>
      %212 = vector.broadcast %209 : f32 to vector<2x256xf32>
      %213 = arith.mulf %212, %41 : vector<2x256xf32>
      %214 = arith.addf %211, %213 : vector<2x256xf32>
      %215 = arith.addf %207, %214 : vector<2x256xf32>
      %c1_i32 = arith.constant 1 : i32
      %216 = tpu.dynamic_rotate %215 by %c1_i32 dim 1 : vector<2x256xf32>, i32 -> vector<2x256xf32>
      %c2_24 = arith.constant 2 : index
      %c0_25 = arith.constant 0 : index
      %217 = vector.load %arg4[%c2_24, %c0_25] : memref<7x256xf32, #tpu.memory_space<vmem>>, vector<1x256xf32>
      %218 = vector.broadcast %217 : vector<1x256xf32> to vector<2x256xf32>
      %219 = arith.mulf %216, %218 : vector<2x256xf32>
      %220 = arith.addf %160, %219 : vector<2x256xf32>
      %c3 = arith.constant 3 : index
      %221 = memref.load %arg3[%c3] : memref<98xf32, #tpu.memory_space<smem>>
      %c52 = arith.constant 52 : index
      %222 = memref.load %arg3[%c52] : memref<98xf32, #tpu.memory_space<smem>>
      %223 = vector.broadcast %221 : f32 to vector<2x256xf32>
      %224 = arith.mulf %223, %17 : vector<2x256xf32>
      %225 = vector.broadcast %222 : f32 to vector<2x256xf32>
      %226 = arith.mulf %225, %19 : vector<2x256xf32>
      %227 = arith.addf %224, %226 : vector<2x256xf32>
      %c10 = arith.constant 10 : index
      %228 = memref.load %arg3[%c10] : memref<98xf32, #tpu.memory_space<smem>>
      %c59 = arith.constant 59 : index
      %229 = memref.load %arg3[%c59] : memref<98xf32, #tpu.memory_space<smem>>
      %230 = vector.broadcast %228 : f32 to vector<2x256xf32>
      %231 = arith.mulf %230, %21 : vector<2x256xf32>
      %232 = vector.broadcast %229 : f32 to vector<2x256xf32>
      %233 = arith.mulf %232, %23 : vector<2x256xf32>
      %234 = arith.addf %231, %233 : vector<2x256xf32>
      %235 = arith.addf %227, %234 : vector<2x256xf32>
      %c17 = arith.constant 17 : index
      %236 = memref.load %arg3[%c17] : memref<98xf32, #tpu.memory_space<smem>>
      %c66 = arith.constant 66 : index
      %237 = memref.load %arg3[%c66] : memref<98xf32, #tpu.memory_space<smem>>
      %238 = vector.broadcast %236 : f32 to vector<2x256xf32>
      %239 = arith.mulf %238, %25 : vector<2x256xf32>
      %240 = vector.broadcast %237 : f32 to vector<2x256xf32>
      %241 = arith.mulf %240, %27 : vector<2x256xf32>
      %242 = arith.addf %239, %241 : vector<2x256xf32>
      %243 = arith.addf %235, %242 : vector<2x256xf32>
      %c24 = arith.constant 24 : index
      %244 = memref.load %arg3[%c24] : memref<98xf32, #tpu.memory_space<smem>>
      %c73 = arith.constant 73 : index
      %245 = memref.load %arg3[%c73] : memref<98xf32, #tpu.memory_space<smem>>
      %246 = vector.broadcast %244 : f32 to vector<2x256xf32>
      %247 = arith.mulf %246, %28 : vector<2x256xf32>
      %248 = vector.broadcast %245 : f32 to vector<2x256xf32>
      %249 = arith.mulf %248, %29 : vector<2x256xf32>
      %250 = arith.addf %247, %249 : vector<2x256xf32>
      %251 = arith.addf %243, %250 : vector<2x256xf32>
      %c31 = arith.constant 31 : index
      %252 = memref.load %arg3[%c31] : memref<98xf32, #tpu.memory_space<smem>>
      %c80 = arith.constant 80 : index
      %253 = memref.load %arg3[%c80] : memref<98xf32, #tpu.memory_space<smem>>
      %254 = vector.broadcast %252 : f32 to vector<2x256xf32>
      %255 = arith.mulf %254, %31 : vector<2x256xf32>
      %256 = vector.broadcast %253 : f32 to vector<2x256xf32>
      %257 = arith.mulf %256, %33 : vector<2x256xf32>
      %258 = arith.addf %255, %257 : vector<2x256xf32>
      %259 = arith.addf %251, %258 : vector<2x256xf32>
      %c38 = arith.constant 38 : index
      %260 = memref.load %arg3[%c38] : memref<98xf32, #tpu.memory_space<smem>>
      %c87 = arith.constant 87 : index
      %261 = memref.load %arg3[%c87] : memref<98xf32, #tpu.memory_space<smem>>
      %262 = vector.broadcast %260 : f32 to vector<2x256xf32>
      %263 = arith.mulf %262, %35 : vector<2x256xf32>
      %264 = vector.broadcast %261 : f32 to vector<2x256xf32>
      %265 = arith.mulf %264, %37 : vector<2x256xf32>
      %266 = arith.addf %263, %265 : vector<2x256xf32>
      %267 = arith.addf %259, %266 : vector<2x256xf32>
      %c45 = arith.constant 45 : index
      %268 = memref.load %arg3[%c45] : memref<98xf32, #tpu.memory_space<smem>>
      %c94 = arith.constant 94 : index
      %269 = memref.load %arg3[%c94] : memref<98xf32, #tpu.memory_space<smem>>
      %270 = vector.broadcast %268 : f32 to vector<2x256xf32>
      %271 = arith.mulf %270, %39 : vector<2x256xf32>
      %272 = vector.broadcast %269 : f32 to vector<2x256xf32>
      %273 = arith.mulf %272, %41 : vector<2x256xf32>
      %274 = arith.addf %271, %273 : vector<2x256xf32>
      %275 = arith.addf %267, %274 : vector<2x256xf32>
      %276 = arith.addf %220, %275 : vector<2x256xf32>
      %c4 = arith.constant 4 : index
      %277 = memref.load %arg3[%c4] : memref<98xf32, #tpu.memory_space<smem>>
      %c53 = arith.constant 53 : index
      %278 = memref.load %arg3[%c53] : memref<98xf32, #tpu.memory_space<smem>>
      %279 = vector.broadcast %277 : f32 to vector<2x256xf32>
      %280 = arith.mulf %279, %17 : vector<2x256xf32>
      %281 = vector.broadcast %278 : f32 to vector<2x256xf32>
      %282 = arith.mulf %281, %19 : vector<2x256xf32>
      %283 = arith.addf %280, %282 : vector<2x256xf32>
      %c11 = arith.constant 11 : index
      %284 = memref.load %arg3[%c11] : memref<98xf32, #tpu.memory_space<smem>>
      %c60 = arith.constant 60 : index
      %285 = memref.load %arg3[%c60] : memref<98xf32, #tpu.memory_space<smem>>
      %286 = vector.broadcast %284 : f32 to vector<2x256xf32>
      %287 = arith.mulf %286, %21 : vector<2x256xf32>
      %288 = vector.broadcast %285 : f32 to vector<2x256xf32>
      %289 = arith.mulf %288, %23 : vector<2x256xf32>
      %290 = arith.addf %287, %289 : vector<2x256xf32>
      %291 = arith.addf %283, %290 : vector<2x256xf32>
      %c18 = arith.constant 18 : index
      %292 = memref.load %arg3[%c18] : memref<98xf32, #tpu.memory_space<smem>>
      %c67 = arith.constant 67 : index
      %293 = memref.load %arg3[%c67] : memref<98xf32, #tpu.memory_space<smem>>
      %294 = vector.broadcast %292 : f32 to vector<2x256xf32>
      %295 = arith.mulf %294, %25 : vector<2x256xf32>
      %296 = vector.broadcast %293 : f32 to vector<2x256xf32>
      %297 = arith.mulf %296, %27 : vector<2x256xf32>
      %298 = arith.addf %295, %297 : vector<2x256xf32>
      %299 = arith.addf %291, %298 : vector<2x256xf32>
      %c25 = arith.constant 25 : index
      %300 = memref.load %arg3[%c25] : memref<98xf32, #tpu.memory_space<smem>>
      %c74 = arith.constant 74 : index
      %301 = memref.load %arg3[%c74] : memref<98xf32, #tpu.memory_space<smem>>
      %302 = vector.broadcast %300 : f32 to vector<2x256xf32>
      %303 = arith.mulf %302, %28 : vector<2x256xf32>
      %304 = vector.broadcast %301 : f32 to vector<2x256xf32>
      %305 = arith.mulf %304, %29 : vector<2x256xf32>
      %306 = arith.addf %303, %305 : vector<2x256xf32>
      %307 = arith.addf %299, %306 : vector<2x256xf32>
      %c32 = arith.constant 32 : index
      %308 = memref.load %arg3[%c32] : memref<98xf32, #tpu.memory_space<smem>>
      %c81 = arith.constant 81 : index
      %309 = memref.load %arg3[%c81] : memref<98xf32, #tpu.memory_space<smem>>
      %310 = vector.broadcast %308 : f32 to vector<2x256xf32>
      %311 = arith.mulf %310, %31 : vector<2x256xf32>
      %312 = vector.broadcast %309 : f32 to vector<2x256xf32>
      %313 = arith.mulf %312, %33 : vector<2x256xf32>
      %314 = arith.addf %311, %313 : vector<2x256xf32>
      %315 = arith.addf %307, %314 : vector<2x256xf32>
      %c39 = arith.constant 39 : index
      %316 = memref.load %arg3[%c39] : memref<98xf32, #tpu.memory_space<smem>>
      %c88 = arith.constant 88 : index
      %317 = memref.load %arg3[%c88] : memref<98xf32, #tpu.memory_space<smem>>
      %318 = vector.broadcast %316 : f32 to vector<2x256xf32>
      %319 = arith.mulf %318, %35 : vector<2x256xf32>
      %320 = vector.broadcast %317 : f32 to vector<2x256xf32>
      %321 = arith.mulf %320, %37 : vector<2x256xf32>
      %322 = arith.addf %319, %321 : vector<2x256xf32>
      %323 = arith.addf %315, %322 : vector<2x256xf32>
      %c46 = arith.constant 46 : index
      %324 = memref.load %arg3[%c46] : memref<98xf32, #tpu.memory_space<smem>>
      %c95 = arith.constant 95 : index
      %325 = memref.load %arg3[%c95] : memref<98xf32, #tpu.memory_space<smem>>
      %326 = vector.broadcast %324 : f32 to vector<2x256xf32>
      %327 = arith.mulf %326, %39 : vector<2x256xf32>
      %328 = vector.broadcast %325 : f32 to vector<2x256xf32>
      %329 = arith.mulf %328, %41 : vector<2x256xf32>
      %330 = arith.addf %327, %329 : vector<2x256xf32>
      %331 = arith.addf %323, %330 : vector<2x256xf32>
      %c255_i32 = arith.constant 255 : i32
      %332 = tpu.dynamic_rotate %331 by %c255_i32 dim 1 : vector<2x256xf32>, i32 -> vector<2x256xf32>
      %c4_26 = arith.constant 4 : index
      %c0_27 = arith.constant 0 : index
      %333 = vector.load %arg4[%c4_26, %c0_27] : memref<7x256xf32, #tpu.memory_space<vmem>>, vector<1x256xf32>
      %334 = vector.broadcast %333 : vector<1x256xf32> to vector<2x256xf32>
      %335 = arith.mulf %332, %334 : vector<2x256xf32>
      %336 = arith.addf %276, %335 : vector<2x256xf32>
      %c5 = arith.constant 5 : index
      %337 = memref.load %arg3[%c5] : memref<98xf32, #tpu.memory_space<smem>>
      %c54 = arith.constant 54 : index
      %338 = memref.load %arg3[%c54] : memref<98xf32, #tpu.memory_space<smem>>
      %339 = vector.broadcast %337 : f32 to vector<2x256xf32>
      %340 = arith.mulf %339, %17 : vector<2x256xf32>
      %341 = vector.broadcast %338 : f32 to vector<2x256xf32>
      %342 = arith.mulf %341, %19 : vector<2x256xf32>
      %343 = arith.addf %340, %342 : vector<2x256xf32>
      %c12 = arith.constant 12 : index
      %344 = memref.load %arg3[%c12] : memref<98xf32, #tpu.memory_space<smem>>
      %c61 = arith.constant 61 : index
      %345 = memref.load %arg3[%c61] : memref<98xf32, #tpu.memory_space<smem>>
      %346 = vector.broadcast %344 : f32 to vector<2x256xf32>
      %347 = arith.mulf %346, %21 : vector<2x256xf32>
      %348 = vector.broadcast %345 : f32 to vector<2x256xf32>
      %349 = arith.mulf %348, %23 : vector<2x256xf32>
      %350 = arith.addf %347, %349 : vector<2x256xf32>
      %351 = arith.addf %343, %350 : vector<2x256xf32>
      %c19 = arith.constant 19 : index
      %352 = memref.load %arg3[%c19] : memref<98xf32, #tpu.memory_space<smem>>
      %c68 = arith.constant 68 : index
      %353 = memref.load %arg3[%c68] : memref<98xf32, #tpu.memory_space<smem>>
      %354 = vector.broadcast %352 : f32 to vector<2x256xf32>
      %355 = arith.mulf %354, %25 : vector<2x256xf32>
      %356 = vector.broadcast %353 : f32 to vector<2x256xf32>
      %357 = arith.mulf %356, %27 : vector<2x256xf32>
      %358 = arith.addf %355, %357 : vector<2x256xf32>
      %359 = arith.addf %351, %358 : vector<2x256xf32>
      %c26 = arith.constant 26 : index
      %360 = memref.load %arg3[%c26] : memref<98xf32, #tpu.memory_space<smem>>
      %c75 = arith.constant 75 : index
      %361 = memref.load %arg3[%c75] : memref<98xf32, #tpu.memory_space<smem>>
      %362 = vector.broadcast %360 : f32 to vector<2x256xf32>
      %363 = arith.mulf %362, %28 : vector<2x256xf32>
      %364 = vector.broadcast %361 : f32 to vector<2x256xf32>
      %365 = arith.mulf %364, %29 : vector<2x256xf32>
      %366 = arith.addf %363, %365 : vector<2x256xf32>
      %367 = arith.addf %359, %366 : vector<2x256xf32>
      %c33 = arith.constant 33 : index
      %368 = memref.load %arg3[%c33] : memref<98xf32, #tpu.memory_space<smem>>
      %c82 = arith.constant 82 : index
      %369 = memref.load %arg3[%c82] : memref<98xf32, #tpu.memory_space<smem>>
      %370 = vector.broadcast %368 : f32 to vector<2x256xf32>
      %371 = arith.mulf %370, %31 : vector<2x256xf32>
      %372 = vector.broadcast %369 : f32 to vector<2x256xf32>
      %373 = arith.mulf %372, %33 : vector<2x256xf32>
      %374 = arith.addf %371, %373 : vector<2x256xf32>
      %375 = arith.addf %367, %374 : vector<2x256xf32>
      %c40 = arith.constant 40 : index
      %376 = memref.load %arg3[%c40] : memref<98xf32, #tpu.memory_space<smem>>
      %c89 = arith.constant 89 : index
      %377 = memref.load %arg3[%c89] : memref<98xf32, #tpu.memory_space<smem>>
      %378 = vector.broadcast %376 : f32 to vector<2x256xf32>
      %379 = arith.mulf %378, %35 : vector<2x256xf32>
      %380 = vector.broadcast %377 : f32 to vector<2x256xf32>
      %381 = arith.mulf %380, %37 : vector<2x256xf32>
      %382 = arith.addf %379, %381 : vector<2x256xf32>
      %383 = arith.addf %375, %382 : vector<2x256xf32>
      %c47 = arith.constant 47 : index
      %384 = memref.load %arg3[%c47] : memref<98xf32, #tpu.memory_space<smem>>
      %c96 = arith.constant 96 : index
      %385 = memref.load %arg3[%c96] : memref<98xf32, #tpu.memory_space<smem>>
      %386 = vector.broadcast %384 : f32 to vector<2x256xf32>
      %387 = arith.mulf %386, %39 : vector<2x256xf32>
      %388 = vector.broadcast %385 : f32 to vector<2x256xf32>
      %389 = arith.mulf %388, %41 : vector<2x256xf32>
      %390 = arith.addf %387, %389 : vector<2x256xf32>
      %391 = arith.addf %383, %390 : vector<2x256xf32>
      %c254_i32 = arith.constant 254 : i32
      %392 = tpu.dynamic_rotate %391 by %c254_i32 dim 1 : vector<2x256xf32>, i32 -> vector<2x256xf32>
      %c5_28 = arith.constant 5 : index
      %c0_29 = arith.constant 0 : index
      %393 = vector.load %arg4[%c5_28, %c0_29] : memref<7x256xf32, #tpu.memory_space<vmem>>, vector<1x256xf32>
      %394 = vector.broadcast %393 : vector<1x256xf32> to vector<2x256xf32>
      %395 = arith.mulf %392, %394 : vector<2x256xf32>
      %396 = arith.addf %336, %395 : vector<2x256xf32>
      %c6 = arith.constant 6 : index
      %397 = memref.load %arg3[%c6] : memref<98xf32, #tpu.memory_space<smem>>
      %c55 = arith.constant 55 : index
      %398 = memref.load %arg3[%c55] : memref<98xf32, #tpu.memory_space<smem>>
      %399 = vector.broadcast %397 : f32 to vector<2x256xf32>
      %400 = arith.mulf %399, %17 : vector<2x256xf32>
      %401 = vector.broadcast %398 : f32 to vector<2x256xf32>
      %402 = arith.mulf %401, %19 : vector<2x256xf32>
      %403 = arith.addf %400, %402 : vector<2x256xf32>
      %c13 = arith.constant 13 : index
      %404 = memref.load %arg3[%c13] : memref<98xf32, #tpu.memory_space<smem>>
      %c62 = arith.constant 62 : index
      %405 = memref.load %arg3[%c62] : memref<98xf32, #tpu.memory_space<smem>>
      %406 = vector.broadcast %404 : f32 to vector<2x256xf32>
      %407 = arith.mulf %406, %21 : vector<2x256xf32>
      %408 = vector.broadcast %405 : f32 to vector<2x256xf32>
      %409 = arith.mulf %408, %23 : vector<2x256xf32>
      %410 = arith.addf %407, %409 : vector<2x256xf32>
      %411 = arith.addf %403, %410 : vector<2x256xf32>
      %c20 = arith.constant 20 : index
      %412 = memref.load %arg3[%c20] : memref<98xf32, #tpu.memory_space<smem>>
      %c69 = arith.constant 69 : index
      %413 = memref.load %arg3[%c69] : memref<98xf32, #tpu.memory_space<smem>>
      %414 = vector.broadcast %412 : f32 to vector<2x256xf32>
      %415 = arith.mulf %414, %25 : vector<2x256xf32>
      %416 = vector.broadcast %413 : f32 to vector<2x256xf32>
      %417 = arith.mulf %416, %27 : vector<2x256xf32>
      %418 = arith.addf %415, %417 : vector<2x256xf32>
      %419 = arith.addf %411, %418 : vector<2x256xf32>
      %c27 = arith.constant 27 : index
      %420 = memref.load %arg3[%c27] : memref<98xf32, #tpu.memory_space<smem>>
      %c76 = arith.constant 76 : index
      %421 = memref.load %arg3[%c76] : memref<98xf32, #tpu.memory_space<smem>>
      %422 = vector.broadcast %420 : f32 to vector<2x256xf32>
      %423 = arith.mulf %422, %28 : vector<2x256xf32>
      %424 = vector.broadcast %421 : f32 to vector<2x256xf32>
      %425 = arith.mulf %424, %29 : vector<2x256xf32>
      %426 = arith.addf %423, %425 : vector<2x256xf32>
      %427 = arith.addf %419, %426 : vector<2x256xf32>
      %c34 = arith.constant 34 : index
      %428 = memref.load %arg3[%c34] : memref<98xf32, #tpu.memory_space<smem>>
      %c83 = arith.constant 83 : index
      %429 = memref.load %arg3[%c83] : memref<98xf32, #tpu.memory_space<smem>>
      %430 = vector.broadcast %428 : f32 to vector<2x256xf32>
      %431 = arith.mulf %430, %31 : vector<2x256xf32>
      %432 = vector.broadcast %429 : f32 to vector<2x256xf32>
      %433 = arith.mulf %432, %33 : vector<2x256xf32>
      %434 = arith.addf %431, %433 : vector<2x256xf32>
      %435 = arith.addf %427, %434 : vector<2x256xf32>
      %c41 = arith.constant 41 : index
      %436 = memref.load %arg3[%c41] : memref<98xf32, #tpu.memory_space<smem>>
      %c90 = arith.constant 90 : index
      %437 = memref.load %arg3[%c90] : memref<98xf32, #tpu.memory_space<smem>>
      %438 = vector.broadcast %436 : f32 to vector<2x256xf32>
      %439 = arith.mulf %438, %35 : vector<2x256xf32>
      %440 = vector.broadcast %437 : f32 to vector<2x256xf32>
      %441 = arith.mulf %440, %37 : vector<2x256xf32>
      %442 = arith.addf %439, %441 : vector<2x256xf32>
      %443 = arith.addf %435, %442 : vector<2x256xf32>
      %c48 = arith.constant 48 : index
      %444 = memref.load %arg3[%c48] : memref<98xf32, #tpu.memory_space<smem>>
      %c97 = arith.constant 97 : index
      %445 = memref.load %arg3[%c97] : memref<98xf32, #tpu.memory_space<smem>>
      %446 = vector.broadcast %444 : f32 to vector<2x256xf32>
      %447 = arith.mulf %446, %39 : vector<2x256xf32>
      %448 = vector.broadcast %445 : f32 to vector<2x256xf32>
      %449 = arith.mulf %448, %41 : vector<2x256xf32>
      %450 = arith.addf %447, %449 : vector<2x256xf32>
      %451 = arith.addf %443, %450 : vector<2x256xf32>
      %c253_i32 = arith.constant 253 : i32
      %452 = tpu.dynamic_rotate %451 by %c253_i32 dim 1 : vector<2x256xf32>, i32 -> vector<2x256xf32>
      %c6_30 = arith.constant 6 : index
      %c0_31 = arith.constant 0 : index
      %453 = vector.load %arg4[%c6_30, %c0_31] : memref<7x256xf32, #tpu.memory_space<vmem>>, vector<1x256xf32>
      %454 = vector.broadcast %453 : vector<1x256xf32> to vector<2x256xf32>
      %455 = arith.mulf %452, %454 : vector<2x256xf32>
      %456 = arith.addf %396, %455 : vector<2x256xf32>
      %457 = arith.negf %456 : vector<2x256xf32>
      %458 = math.exp %457 : vector<2x256xf32>
      %cst_32 = arith.constant 1.000000e+00 : f32
      %459 = vector.broadcast %cst_32 : f32 to vector<2x256xf32>
      %460 = arith.addf %459, %458 : vector<2x256xf32>
      %461 = arith.divf %459, %460 : vector<2x256xf32>
      %c0_33 = arith.constant 0 : index
      %c0_34 = arith.constant 0 : index
      %462 = vector.load %arg5[%c0_33, %c0_34] : memref<2x256xf32, #tpu.memory_space<vmem>>, vector<2x256xf32>
      tpu.vector_store %arg5[%c0_33, %c0_34], %461 {strides = array<i32>} : memref<2x256xf32, #tpu.memory_space<vmem>>, vector<2x256xf32>,
    } else {
    }
    return
  }
  func.func @transform_0(%arg0: i32, %arg1: i32) -> (i32, i32, i32) {
    %c0_i32 = arith.constant 0 : i32
    %c0_i32_0 = arith.constant 0 : i32
    return %arg0, %arg1, %c0_i32 : i32, i32, i32
  }
  func.func @transform_1(%arg0: i32, %arg1: i32) -> i32 {
    %c0_i32 = arith.constant 0 : i32
    %c0_i32_0 = arith.constant 0 : i32
    return %c0_i32 : i32
  }
  func.func @transform_2(%arg0: i32, %arg1: i32) -> (i32, i32) {
    %c0_i32 = arith.constant 0 : i32
    %c0_i32_0 = arith.constant 0 : i32
    %c0_i32_1 = arith.constant 0 : i32
    return %c0_i32, %c0_i32_0 : i32, i32
  }
  func.func @transform_3(%arg0: i32, %arg1: i32) -> (i32, i32) {
    %c0_i32 = arith.constant 0 : i32
    %c0_i32_0 = arith.constant 0 : i32
    return %arg0, %c0_i32 : i32, i32
  }
}

</mosaic_0001>

<llo_original>
// kernel: tpu_custom_call.1
$region0: #{tpu_custom_call.1}
  #allocation0 [shape = 'u32[]', space=smem, size = 0x4, offset = 0x4, fixed_abs, tag = 'smem constant byte address 0x4 - core index']
  #allocation1 [shape = 'u32[144,128]{1,0:T(1,128)}', space=vmem, size = 0x12000, scoped, tag = 'internal scratch']
  #allocation2 [shape = 'f32[2,384]{1,0:T(2,128)}', space=vmem, size = 0xc00, scoped, tag = 'scratch operand']
  #allocation3 [shape = 'f32[2,384]{1,0:T(2,128)}', space=vmem, size = 0xc00, scoped, tag = 'scratch operand']
  %s0 = inlined_call_operand.hbm [shape: f32[2,4,256], index: 0, kind: input, shape index: {}]
  %s1 = inlined_call_operand.vmem [shape: f32[98], index: 1, kind: input, shape index: {}]
  %s2 = inlined_call_operand.hbm [shape: f32[7,256], index: 2, kind: input, shape index: {}]
  %s3 = inlined_call_operand.hbm [shape: f32[2,256], index: 3, kind: output, shape index: {}]
  %s4 = sld [smem:[#allocation0]]
  $region46: #{tpu_custom_call.1} parent=0
    _
  %s6 = ssub.s32 1, %s4
  %s7 = scalar_select 0, %s6, %s4
  $region1: #{tpu_custom_call.1} parent=0
    #allocation4 [shape = 'u8[8192]{0}', space=vmem, size = 0x2000, scoped, tag = 'input window, operand 0, single buffered']
    #allocation5 [shape = 's32[1]{0}', space=sflag, size = 0x4, scoped, tag = 'scoped memory for tpu_custom_call.1']
    #allocation6 [shape = 's32[1]{0}', space=sflag, size = 0x4, scoped, tag = 'scoped memory for tpu_custom_call.1']
    #allocation7 [shape = 's32[1]{0}', space=sflag, size = 0x4, scoped, tag = 'scoped memory for tpu_custom_call.1']
    #allocation8 [shape = 'u8[512]{0}', space=smem, size = 0x200, scoped, tag = 'input window, operand 1, single buffered']
    #allocation9 [shape = 'u8[8192]{0}', space=vmem, size = 0x2000, scoped, tag = 'input window, operand 2, single buffered']
    #allocation10 [shape = 's32[1]{0}', space=sflag, size = 0x4, scoped, tag = 'scoped memory for tpu_custom_call.1']
    #allocation11 [shape = 'u8[2048]{0}', space=vmem, size = 0x800, scoped, tag = 'output window, operand 0, single buffered']
    %8 = vsyncpa [#allocation5], 0
    %9 = vsyncpa [#allocation7], 0
    %10 = vsyncpa [#allocation10], 0
    %11 = vsyncpa [#allocation6], 0
    // Predicated region
    $region2: #{tpu_custom_call.1} parent=1 // pred_check
      _
    $region3: #{tpu_custom_call.1} parent=1 // pred_check_branch
      %13 = sbr.rel (0) target = $region5
    $region4: #{tpu_custom_call.1} parent=1 // pred_region
      %s15 = ssub.s32 256, 256
      %16 = vsyncadd [#allocation5], %s15
      %s17 = sshll.u32 [#allocation4], 4
      %s18 = int_to_ptr.vmem [resolvable:$true] %s17
      %23 = dma.hbm_to_vmem [thread:$0]  %s0, 256, %s18, [#allocation5], 128, 128, 8
    $region5: #{tpu_custom_call.1} parent=1 // pred_fallthru
      _
    // Predicated region
    $region6: #{tpu_custom_call.1} parent=1 // pred_check
      _
    $region7: #{tpu_custom_call.1} parent=1 // pred_check_branch
      %25 = sbr.rel (0) target = $region9
    $region8: #{tpu_custom_call.1} parent=1 // pred_region
      %s27 = ssub.s32 16, 16
      %28 = vsyncadd [#allocation7], %s27
      %s30 = sshll.u32 %s1, 4
      %s31 = int_to_ptr.vmem [resolvable:$true] %s30
      %33 = dma.vmem_to_smem %s31, 16, [#allocation8], [#allocation7]
    $region9: #{tpu_custom_call.1} parent=1 // pred_fallthru
      _
    // Predicated region
    $region10: #{tpu_custom_call.1} parent=1 // pred_check
      _
    $region11: #{tpu_custom_call.1} parent=1 // pred_check_branch
      %35 = sbr.rel (0) target = $region13
    $region12: #{tpu_custom_call.1} parent=1 // pred_region
      %s37 = ssub.s32 256, 256
      %38 = vsyncadd [#allocation10], %s37
      %s40 = sshll.u32 [#allocation9], 4
      %s41 = int_to_ptr.vmem [resolvable:$true] %s40
      %43 = dma.hbm_to_vmem [thread:$0]  %s2, 256, %s41, [#allocation10]
    $region13: #{tpu_custom_call.1} parent=1 // pred_fallthru
      _
    // Predicated region
    $region14: #{tpu_custom_call.1} parent=1 // pred_check
      _
    $region15: #{tpu_custom_call.1} parent=1 // pred_check_branch
      %45 = sbr.rel (0) target = $region17
    $region16: #{tpu_custom_call.1} parent=1 // pred_region
      %46 = dma.done [#allocation5], 256
    $region17: #{tpu_custom_call.1} parent=1 // pred_fallthru
      _
    // Predicated region
    $region18: #{tpu_custom_call.1} parent=1 // pred_check
      _
    $region19: #{tpu_custom_call.1} parent=1 // pred_check_branch
      %48 = sbr.rel (0) target = $region21
    $region20: #{tpu_custom_call.1} parent=1 // pred_region
      %49 = dma.done [#allocation7], 16
    $region21: #{tpu_custom_call.1} parent=1 // pred_fallthru
      _
    // Predicated region
    $region22: #{tpu_custom_call.1} parent=1 // pred_check
      _
    $region23: #{tpu_custom_call.1} parent=1 // pred_check_branch
      %51 = sbr.rel (0) target = $region25
    $region24: #{tpu_custom_call.1} parent=1 // pred_region
      %52 = dma.done [#allocation10], 256
    $region25: #{tpu_custom_call.1} parent=1 // pred_fallthru
      _
    %53 = sfence
    %v54 = vld [vmem:[#allocation4] sm:$0xff]
    %v55 = vld [vmem:[#allocation4 + $0x8] sm:$0xff]
    %v58 = vcombine.high %v54, %v54
    %v59 = vcombine.high %v55, %v55
    %vm62 = vcmask 1043456
    %v63 = vsel %vm62, %v54, 0.0
    %v64 = vrot.slane %v63, 4
    %v65 = vadd.f32 %v63, %v64
    %v66 = vrot.slane %v65, 2
    %v67 = vadd.f32 %v65, %v66
    %v68 = vrot.slane %v67, 1
    %v69 = vadd.f32 %v67, %v68
    %v70 = vsel %vm62, %v58, 0.0
    %v71 = vrot.slane %v70, 4
    %v72 = vadd.f32 %v70, %v71
    %v73 = vrot.slane %v72, 2
    %v74 = vadd.f32 %v72, %v73
    %v75 = vrot.slane %v74, 1
    %v76 = vadd.f32 %v74, %v75
    %v77 = vsel %vm62, %v55, 0.0
    %v78 = vrot.slane %v77, 4
    %v79 = vadd.f32 %v77, %v78
    %v80 = vrot.slane %v79, 2
    %v81 = vadd.f32 %v79, %v80
    %v82 = vrot.slane %v81, 1
    %v83 = vadd.f32 %v81, %v82
    %v84 = vsel %vm62, %v59, 0.0
    %v85 = vrot.slane %v84, 4
    %v86 = vadd.f32 %v84, %v85
    %v87 = vrot.slane %v86, 2
    %v88 = vadd.f32 %v86, %v87
    %v89 = vrot.slane %v88, 1
    %v90 = vadd.f32 %v88, %v89
    %v91 = vsel %vm62, %v54, -inf
    %v92 = vrot.slane %v91, 4
    %v93 = vmax.f32 %v91, %v92
    %v94 = vrot.slane %v93, 2
    %v95 = vmax.f32 %v93, %v94
    %v96 = vrot.slane %v95, 1
    %v97 = vmax.f32 %v95, %v96
    %v98 = vsel %vm62, %v58, -inf
    %v99 = vrot.slane %v98, 4
    %v100 = vmax.f32 %v98, %v99
    %v101 = vrot.slane %v100, 2
    %v102 = vmax.f32 %v100, %v101
    %v103 = vrot.slane %v102, 1
    %v104 = vmax.f32 %v102, %v103
    %v105 = vsel %vm62, %v55, -inf
    %v106 = vrot.slane %v105, 4
    %v107 = vmax.f32 %v105, %v106
    %v108 = vrot.slane %v107, 2
    %v109 = vmax.f32 %v107, %v108
    %v110 = vrot.slane %v109, 1
    %v111 = vmax.f32 %v109, %v110
    %v112 = vsel %vm62, %v59, -inf
    %v113 = vrot.slane %v112, 4
    %v114 = vmax.f32 %v112, %v113
    %v115 = vrot.slane %v114, 2
    %v116 = vmax.f32 %v114, %v115
    %v117 = vrot.slane %v116, 1
    %v118 = vmax.f32 %v116, %v117
    %p119 = scmp.eq.s32.totalorder 0, 0
    // Predicated region
    $region26: #{tpu_custom_call.1} parent=1 // pred_check
      %p120 = pneg %p119
    $region27: #{tpu_custom_call.1} parent=1 // pred_check_branch
      %122 = sbr.rel (%p120) target = $region29
    $region28: #{tpu_custom_call.1} parent=1 // pred_region
      %123 = vst [vmem:[#allocation2 + $0x4] sm:$0x3] 0.0
      %124 = vst [vmem:[#allocation3 + $0x4] sm:$0x3] 0.0
      %v129 = vcombine.low %v69, %v76
      %v131 = vunpack.c.l.s4 1983009808
      %v132 = vunpack.c.0.s8 %v131
      %v133 = vlaneseq
      %v134 = vshrl.u32 %v133, 7
      %v135 = vsub.s32 %v132, %v134
      %v136 = vrot.slane %v129, %v135
      %v137 = vcombine.low %v83, %v90
      %v139 = vunpack.c.l.s4 1983009808
      %v140 = vunpack.c.0.s8 %v139
      %v141 = vlaneseq
      %v142 = vshrl.u32 %v141, 7
      %v143 = vsub.s32 %v140, %v142
      %v144 = vrot.slane %v137, %v143
      %vm145 = vcmask 1044484
      %v146 = vsel %vm145, %v136, %v136
      %vm147 = vcmask 1046534
      %v148 = vsel %vm147, %v136, %v146
      %v149 = vrot.slane %v144, 7
      %vm150 = vcmask 1041409
      %v151 = vsel %vm150, %v149, %v148
      %vm152 = vcmask 1043459
      %v153 = vsel %vm152, %v149, %v151
      %vm154 = vcmask 1045509
      %v155 = vsel %vm154, %v149, %v153
      %vm156 = vcmask 1047559
      %v157 = vsel %vm156, %v149, %v155
      %159 = vst [vmem:[#allocation2] sm:$0xf] %v157
      %v164 = vcombine.low %v97, %v104
      %v166 = vunpack.c.l.s4 1983009808
      %v167 = vunpack.c.0.s8 %v166
      %v168 = vlaneseq
      %v169 = vshrl.u32 %v168, 7
      %v170 = vsub.s32 %v167, %v169
      %v171 = vrot.slane %v164, %v170
      %v172 = vcombine.low %v111, %v118
      %v174 = vunpack.c.l.s4 1983009808
      %v175 = vunpack.c.0.s8 %v174
      %v176 = vlaneseq
      %v177 = vshrl.u32 %v176, 7
      %v178 = vsub.s32 %v175, %v177
      %v179 = vrot.slane %v172, %v178
      %v180 = vsel %vm145, %v171, %v171
      %v181 = vsel %vm147, %v171, %v180
      %v182 = vrot.slane %v179, 7
      %v183 = vsel %vm150, %v182, %v181
      %v184 = vsel %vm152, %v182, %v183
      %v185 = vsel %vm154, %v182, %v184
      %v186 = vsel %vm156, %v182, %v185
      %188 = vst [vmem:[#allocation3] sm:$0xf] %v186
    $region29: #{tpu_custom_call.1} parent=1 // pred_fallthru
      _
    %p189 = scmp.gt.s32.totalorder 0, 0
    // Predicated region
    $region30: #{tpu_custom_call.1} parent=1 // pred_check
      %p190 = pneg %p189
    $region31: #{tpu_custom_call.1} parent=1 // pred_check_branch
      %192 = sbr.rel (%p190) target = $region33
    $region32: #{tpu_custom_call.1} parent=1 // pred_region
      %v193 = vld [vmem:[#allocation2] sm:$0xf]
      %v198 = vcombine.low %v69, %v76
      %v200 = vunpack.c.l.s4 1983009808
      %v201 = vunpack.c.0.s8 %v200
      %v202 = vlaneseq
      %v203 = vshrl.u32 %v202, 7
      %v204 = vsub.s32 %v201, %v203
      %v205 = vrot.slane %v198, %v204
      %v206 = vcombine.low %v83, %v90
      %v208 = vunpack.c.l.s4 1983009808
      %v209 = vunpack.c.0.s8 %v208
      %v210 = vlaneseq
      %v211 = vshrl.u32 %v210, 7
      %v212 = vsub.s32 %v209, %v211
      %v213 = vrot.slane %v206, %v212
      %vm214 = vcmask 1044484
      %v215 = vsel %vm214, %v205, %v205
      %vm216 = vcmask 1046534
      %v217 = vsel %vm216, %v205, %v215
      %v218 = vrot.slane %v213, 7
      %vm219 = vcmask 1041409
      %v220 = vsel %vm219, %v218, %v217
      %vm221 = vcmask 1043459
      %v222 = vsel %vm221, %v218, %v220
      %vm223 = vcmask 1045509
      %v224 = vsel %vm223, %v218, %v222
      %vm225 = vcmask 1047559
      %v226 = vsel %vm225, %v218, %v224
      %v228 = vadd.f32 %v193, %v226
      %229 = vst [vmem:[#allocation2] sm:$0xf] %v228
      %v230 = vld [vmem:[#allocation3] sm:$0xf]
      %v235 = vcombine.low %v97, %v104
      %v237 = vunpack.c.l.s4 1983009808
      %v238 = vunpack.c.0.s8 %v237
      %v239 = vlaneseq
      %v240 = vshrl.u32 %v239, 7
      %v241 = vsub.s32 %v238, %v240
      %v242 = vrot.slane %v235, %v241
      %v243 = vcombine.low %v111, %v118
      %v245 = vunpack.c.l.s4 1983009808
      %v246 = vunpack.c.0.s8 %v245
      %v247 = vlaneseq
      %v248 = vshrl.u32 %v247, 7
      %v249 = vsub.s32 %v246, %v248
      %v250 = vrot.slane %v243, %v249
      %v251 = vsel %vm214, %v242, %v242
      %v252 = vsel %vm216, %v242, %v251
      %v253 = vrot.slane %v250, 7
      %v254 = vsel %vm219, %v253, %v252
      %v255 = vsel %vm221, %v253, %v254
      %v256 = vsel %vm223, %v253, %v255
      %v257 = vsel %vm225, %v253, %v256
      %v259 = vmax.f32 %v230, %v257
      %260 = vst [vmem:[#allocation3] sm:$0xf] %v259
    $region33: #{tpu_custom_call.1} parent=1 // pred_fallthru
      _
    // Predicated region
    $region34: #{tpu_custom_call.1} parent=1 // pred_check
      %p261 = pneg %p119
    $region35: #{tpu_custom_call.1} parent=1 // pred_check_branch
      %263 = sbr.rel (%p261) target = $region37
    $region36: #{tpu_custom_call.1} parent=1 // pred_region
      %v264 = vld [vmem:[#allocation2] sm:$0x3f]
      %v265 = vmul.f32 %v264, 0.25
      %v266 = vld [vmem:[#allocation3] sm:$0x3f]
      %v268 = vcombine.high %v265, %v265
      %v270 = vunpack.c.l.s4 1983009808
      %v271 = vunpack.c.0.s8 %v270
      %v272 = vlaneseq
      %v273 = vshrl.u32 %v272, 7
      %v274 = vsub.s32 %v271, %v273
      %v275 = vrot.slane %v265, %v274
      %v277 = vunpack.c.l.s4 1983009808
      %v278 = vunpack.c.0.s8 %v277
      %v279 = vlaneseq
      %v280 = vshrl.u32 %v279, 7
      %v281 = vsub.s32 %v278, %v280
      %v282 = vrot.slane %v268, %v281
      %v283 = vcombine.high %v275, %v275
      %287 = vrot.lane.b32.xlu0 %v275, 48
      %v288 = vpop.permute.xlu0 %287
      %289 = vrot.lane.b32.xlu0 %v283, 48
      %v290 = vpop.permute.xlu0 %289
      %291 = vrot.lane.b32.xlu0 %v282, 48
      %v292 = vpop.permute.xlu0 %291
      %v293 = vlaneseq
      %v294 = vand.u32 %v293, 127
      %vm295 = vcmp.lt.s32.totalorder %v294, 48
      %v296 = vsel %vm295, %v288, %v290
      %v297 = vsel %vm295, %v292, %v288
      %v299 = vcombine.high %v266, %v266
      %v301 = vunpack.c.l.s4 1983009808
      %v302 = vunpack.c.0.s8 %v301
      %v303 = vlaneseq
      %v304 = vshrl.u32 %v303, 7
      %v305 = vsub.s32 %v302, %v304
      %v306 = vrot.slane %v266, %v305
      %v308 = vunpack.c.l.s4 1983009808
      %v309 = vunpack.c.0.s8 %v308
      %v310 = vlaneseq
      %v311 = vshrl.u32 %v310, 7
      %v312 = vsub.s32 %v309, %v311
      %v313 = vrot.slane %v299, %v312
      %v314 = vcombine.high %v306, %v306
      %318 = vrot.lane.b32.xlu0 %v306, 48
      %v319 = vpop.permute.xlu0 %318
      %320 = vrot.lane.b32.xlu0 %v314, 48
      %v321 = vpop.permute.xlu0 %320
      %322 = vrot.lane.b32.xlu0 %v313, 48
      %v323 = vpop.permute.xlu0 %322
      %v324 = vsel %vm295, %v319, %v321
      %v325 = vsel %vm295, %v323, %v319
      %326 = vrot.lane.b32.xlu0 %v275, 32
      %v327 = vpop.permute.xlu0 %326
      %328 = vrot.lane.b32.xlu0 %v283, 32
      %v329 = vpop.permute.xlu0 %328
      %330 = vrot.lane.b32.xlu0 %v282, 32
      %v331 = vpop.permute.xlu0 %330
      %vm332 = vcmp.lt.s32.totalorder %v294, 32
      %v333 = vsel %vm332, %v327, %v329
      %v334 = vsel %vm332, %v331, %v327
      %335 = vrot.lane.b32.xlu0 %v306, 32
      %v336 = vpop.permute.xlu0 %335
      %337 = vrot.lane.b32.xlu0 %v314, 32
      %v338 = vpop.permute.xlu0 %337
      %339 = vrot.lane.b32.xlu0 %v313, 32
      %v340 = vpop.permute.xlu0 %339
      %v341 = vsel %vm332, %v336, %v338
      %v342 = vsel %vm332, %v340, %v336
      %343 = vrot.lane.b32.xlu0 %v275, 16
      %v344 = vpop.permute.xlu0 %343
      %345 = vrot.lane.b32.xlu0 %v283, 16
      %v346 = vpop.permute.xlu0 %345
      %347 = vrot.lane.b32.xlu0 %v282, 16
      %v348 = vpop.permute.xlu0 %347
      %vm349 = vcmp.lt.s32.totalorder %v294, 16
      %v350 = vsel %vm349, %v344, %v346
      %v351 = vsel %vm349, %v348, %v344
      %352 = vrot.lane.b32.xlu0 %v306, 16
      %v353 = vpop.permute.xlu0 %352
      %354 = vrot.lane.b32.xlu0 %v314, 16
      %v355 = vpop.permute.xlu0 %354
      %356 = vrot.lane.b32.xlu0 %v313, 16
      %v357 = vpop.permute.xlu0 %356
      %v358 = vsel %vm349, %v353, %v355
      %v359 = vsel %vm349, %v357, %v353
      %360 = vrot.lane.b32.xlu0 %v275, 112
      %v361 = vpop.permute.xlu0 %360
      %362 = vrot.lane.b32.xlu0 %v283, 112
      %v363 = vpop.permute.xlu0 %362
      %364 = vrot.lane.b32.xlu0 %v282, 112
      %v365 = vpop.permute.xlu0 %364
      %vm366 = vcmp.lt.s32.totalorder %v294, 112
      %v367 = vsel %vm366, %v363, %v365
      %v368 = vsel %vm366, %v361, %v363
      %369 = vrot.lane.b32.xlu0 %v306, 112
      %v370 = vpop.permute.xlu0 %369
      %371 = vrot.lane.b32.xlu0 %v314, 112
      %v372 = vpop.permute.xlu0 %371
      %373 = vrot.lane.b32.xlu0 %v313, 112
      %v374 = vpop.permute.xlu0 %373
      %v375 = vsel %vm366, %v372, %v374
      %v376 = vsel %vm366, %v370, %v372
      %377 = vrot.lane.b32.xlu0 %v275, 96
      %v378 = vpop.permute.xlu0 %377
      %379 = vrot.lane.b32.xlu0 %v283, 96
      %v380 = vpop.permute.xlu0 %379
      %381 = vrot.lane.b32.xlu0 %v282, 96
      %v382 = vpop.permute.xlu0 %381
      %vm383 = vcmp.lt.s32.totalorder %v294, 96
      %v384 = vsel %vm383, %v380, %v382
      %v385 = vsel %vm383, %v378, %v380
      %386 = vrot.lane.b32.xlu0 %v306, 96
      %v387 = vpop.permute.xlu0 %386
      %388 = vrot.lane.b32.xlu0 %v314, 96
      %v389 = vpop.permute.xlu0 %388
      %390 = vrot.lane.b32.xlu0 %v313, 96
      %v391 = vpop.permute.xlu0 %390
      %v392 = vsel %vm383, %v389, %v391
      %v393 = vsel %vm383, %v387, %v389
      %394 = vrot.lane.b32.xlu0 %v275, 80
      %v395 = vpop.permute.xlu0 %394
      %396 = vrot.lane.b32.xlu0 %v283, 80
      %v397 = vpop.permute.xlu0 %396
      %398 = vrot.lane.b32.xlu0 %v282, 80
      %v399 = vpop.permute.xlu0 %398
      %vm400 = vcmp.lt.s32.totalorder %v294, 80
      %v401 = vsel %vm400, %v397, %v399
      %v402 = vsel %vm400, %v395, %v397
      %403 = vrot.lane.b32.xlu0 %v306, 80
      %v404 = vpop.permute.xlu0 %403
      %405 = vrot.lane.b32.xlu0 %v314, 80
      %v406 = vpop.permute.xlu0 %405
      %407 = vrot.lane.b32.xlu0 %v313, 80
      %v408 = vpop.permute.xlu0 %407
      %v409 = vsel %vm400, %v406, %v408
      %v410 = vsel %vm400, %v404, %v406
      %s411 = sld [smem:[#allocation8]]
      %s412 = sld [smem:[#allocation8 + $0x31]]
      %v413 = vstv %s411
      %v414 = vmul.f32 %v413, %v297
      %v415 = vmul.f32 %v413, %v296
      %v416 = vstv %s412
      %v417 = vmul.f32 %v416, %v325
      %v418 = vmul.f32 %v416, %v324
      %v419 = vadd.f32 %v414, %v417
      %v420 = vadd.f32 %v415, %v418
      %s421 = sld [smem:[#allocation8 + $0x7]]
      %s422 = sld [smem:[#allocation8 + $0x38]]
      %v423 = vstv %s421
      %v424 = vmul.f32 %v423, %v334
      %v425 = vmul.f32 %v423, %v333
      %v426 = vstv %s422
      %v427 = vmul.f32 %v426, %v342
      %v428 = vmul.f32 %v426, %v341
      %v429 = vadd.f32 %v424, %v427
      %v430 = vadd.f32 %v425, %v428
      %v431 = vadd.f32 %v419, %v429
      %v432 = vadd.f32 %v420, %v430
      %s433 = sld [smem:[#allocation8 + $0xe]]
      %s434 = sld [smem:[#allocation8 + $0x3f]]
      %v435 = vstv %s433
      %v436 = vmul.f32 %v435, %v351
      %v437 = vmul.f32 %v435, %v350
      %v438 = vstv %s434
      %v439 = vmul.f32 %v438, %v359
      %v440 = vmul.f32 %v438, %v358
      %v441 = vadd.f32 %v436, %v439
      %v442 = vadd.f32 %v437, %v440
      %v443 = vadd.f32 %v431, %v441
      %v444 = vadd.f32 %v432, %v442
      %s445 = sld [smem:[#allocation8 + $0x15]]
      %s446 = sld [smem:[#allocation8 + $0x46]]
      %v447 = vstv %s445
      %v448 = vmul.f32 %v447, %v265
      %v449 = vstv %s446
      %v450 = vmul.f32 %v449, %v266
      %v451 = vadd.f32 %v448, %v450
      %v454 = vunpack.c.l.s4 1983009808
      %v455 = vunpack.c.0.s8 %v454
      %v456 = vlaneseq
      %v457 = vshrl.u32 %v456, 7
      %v458 = vsub.s32 %v455, %v457
      %v459 = vrot.slane %v451, %v458
      %v460 = vcombine.high %v459, %v459
      %v463 = vadd.f32 %v443, %v459
      %v464 = vadd.f32 %v444, %v460
      %s465 = sld [smem:[#allocation8 + $0x1c]]
      %s466 = sld [smem:[#allocation8 + $0x4d]]
      %v467 = vstv %s465
      %v468 = vmul.f32 %v467, %v368
      %v469 = vmul.f32 %v467, %v367
      %v470 = vstv %s466
      %v471 = vmul.f32 %v470, %v376
      %v472 = vmul.f32 %v470, %v375
      %v473 = vadd.f32 %v468, %v471
      %v474 = vadd.f32 %v469, %v472
      %v475 = vadd.f32 %v463, %v473
      %v476 = vadd.f32 %v464, %v474
      %s477 = sld [smem:[#allocation8 + $0x23]]
      %s478 = sld [smem:[#allocation8 + $0x54]]
      %v479 = vstv %s477
      %v480 = vmul.f32 %v479, %v385
      %v481 = vmul.f32 %v479, %v384
      %v482 = vstv %s478
      %v483 = vmul.f32 %v482, %v393
      %v484 = vmul.f32 %v482, %v392
      %v485 = vadd.f32 %v480, %v483
      %v486 = vadd.f32 %v481, %v484
      %v487 = vadd.f32 %v475, %v485
      %v488 = vadd.f32 %v476, %v486
      %s489 = sld [smem:[#allocation8 + $0x2a]]
      %s490 = sld [smem:[#allocation8 + $0x5b]]
      %v491 = vstv %s489
      %v492 = vmul.f32 %v491, %v402
      %v493 = vmul.f32 %v491, %v401
      %v494 = vstv %s490
      %v495 = vmul.f32 %v494, %v410
      %v496 = vmul.f32 %v494, %v409
      %v497 = vadd.f32 %v492, %v495
      %v498 = vadd.f32 %v493, %v496
      %v499 = vadd.f32 %v487, %v497
      %v500 = vadd.f32 %v488, %v498
      %501 = vrot.lane.b32.xlu0 %v499, 3
      %v502 = vpop.permute.xlu0 %501
      %503 = vrot.lane.b32.xlu0 %v500, 3
      %v504 = vpop.permute.xlu0 %503
      %vm505 = vcmp.lt.s32.totalorder %v294, 3
      %v506 = vsel %vm505, %v502, %v504
      %v507 = vsel %vm505, %v504, %v502
      %v508 = vld [vmem:[#allocation9] ss:$8 sm:$0x3]
      %v510 = vlaneseq
      %v511 = vshrl.u32 %v510, 7
      %v512 = vsub.s32 0, %v511
      %v513 = vrot.slane %v508, %v512
      %v514 = vlaneseq
      %v515 = vshrl.u32 %v514, 7
      %v516 = vsub.s32 1, %v515
      %v517 = vrot.slane %v508, %v516
      %v520 = vmul.f32 %v507, %v513
      %v521 = vmul.f32 %v506, %v517
      %s522 = sld [smem:[#allocation8 + $0x1]]
      %s523 = sld [smem:[#allocation8 + $0x32]]
      %v524 = vstv %s522
      %v525 = vmul.f32 %v524, %v297
      %v526 = vmul.f32 %v524, %v296
      %v527 = vstv %s523
      %v528 = vmul.f32 %v527, %v325
      %v529 = vmul.f32 %v527, %v324
      %v530 = vadd.f32 %v525, %v528
      %v531 = vadd.f32 %v526, %v529
      %s532 = sld [smem:[#allocation8 + $0x8]]
      %s533 = sld [smem:[#allocation8 + $0x39]]
      %v534 = vstv %s532
      %v535 = vmul.f32 %v534, %v334
      %v536 = vmul.f32 %v534, %v333
      %v537 = vstv %s533
      %v538 = vmul.f32 %v537, %v342
      %v539 = vmul.f32 %v537, %v341
      %v540 = vadd.f32 %v535, %v538
      %v541 = vadd.f32 %v536, %v539
      %v542 = vadd.f32 %v530, %v540
      %v543 = vadd.f32 %v531, %v541
      %s544 = sld [smem:[#allocation8 + $0xf]]
      %s545 = sld [smem:[#allocation8 + $0x40]]
      %v546 = vstv %s544
      %v547 = vmul.f32 %v546, %v351
      %v548 = vmul.f32 %v546, %v350
      %v549 = vstv %s545
      %v550 = vmul.f32 %v549, %v359
      %v551 = vmul.f32 %v549, %v358
      %v552 = vadd.f32 %v547, %v550
      %v553 = vadd.f32 %v548, %v551
      %v554 = vadd.f32 %v542, %v552
      %v555 = vadd.f32 %v543, %v553
      %s556 = sld [smem:[#allocation8 + $0x16]]
      %s557 = sld [smem:[#allocation8 + $0x47]]
      %v558 = vstv %s556
      %v559 = vmul.f32 %v558, %v265
      %v560 = vstv %s557
      %v561 = vmul.f32 %v560, %v266
      %v562 = vadd.f32 %v559, %v561
      %v565 = vunpack.c.l.s4 1983009808
      %v566 = vunpack.c.0.s8 %v565
      %v567 = vlaneseq
      %v568 = vshrl.u32 %v567, 7
      %v569 = vsub.s32 %v566, %v568
      %v570 = vrot.slane %v562, %v569
      %v571 = vcombine.high %v570, %v570
      %v574 = vadd.f32 %v554, %v570
      %v575 = vadd.f32 %v555, %v571
      %s576 = sld [smem:[#allocation8 + $0x1d]]
      %s577 = sld [smem:[#allocation8 + $0x4e]]
      %v578 = vstv %s576
      %v579 = vmul.f32 %v578, %v368
      %v580 = vmul.f32 %v578, %v367
      %v581 = vstv %s577
      %v582 = vmul.f32 %v581, %v376
      %v583 = vmul.f32 %v581, %v375
      %v584 = vadd.f32 %v579, %v582
      %v585 = vadd.f32 %v580, %v583
      %v586 = vadd.f32 %v574, %v584
      %v587 = vadd.f32 %v575, %v585
      %s588 = sld [smem:[#allocation8 + $0x24]]
      %s589 = sld [smem:[#allocation8 + $0x55]]
      %v590 = vstv %s588
      %v591 = vmul.f32 %v590, %v385
      %v592 = vmul.f32 %v590, %v384
      %v593 = vstv %s589
      %v594 = vmul.f32 %v593, %v393
      %v595 = vmul.f32 %v593, %v392
      %v596 = vadd.f32 %v591, %v594
      %v597 = vadd.f32 %v592, %v595
      %v598 = vadd.f32 %v586, %v596
      %v599 = vadd.f32 %v587, %v597
      %s600 = sld [smem:[#allocation8 + $0x2b]]
      %s601 = sld [smem:[#allocation8 + $0x5c]]
      %v602 = vstv %s600
      %v603 = vmul.f32 %v602, %v402
      %v604 = vmul.f32 %v602, %v401
      %v605 = vstv %s601
      %v606 = vmul.f32 %v605, %v410
      %v607 = vmul.f32 %v605, %v409
      %v608 = vadd.f32 %v603, %v606
      %v609 = vadd.f32 %v604, %v607
      %v610 = vadd.f32 %v598, %v608
      %v611 = vadd.f32 %v599, %v609
      %612 = vrot.lane.b32.xlu0 %v610, 2
      %v613 = vpop.permute.xlu0 %612
      %614 = vrot.lane.b32.xlu0 %v611, 2
      %v615 = vpop.permute.xlu0 %614
      %vm616 = vcmp.lt.s32.totalorder %v294, 2
      %v617 = vsel %vm616, %v613, %v615
      %v618 = vsel %vm616, %v615, %v613
      %s619 = scalar_lea.vmem [#allocation9], 1
      %v620 = vld [vmem:[%s619] ss:$8 sm:$0x3]
      %v622 = vlaneseq
      %v623 = vshrl.u32 %v622, 7
      %v624 = vsub.s32 0, %v623
      %v625 = vrot.slane %v620, %v624
      %v626 = vlaneseq
      %v627 = vshrl.u32 %v626, 7
      %v628 = vsub.s32 1, %v627
      %v629 = vrot.slane %v620, %v628
      %v632 = vmul.f32 %v618, %v625
      %v633 = vmul.f32 %v617, %v629
      %v634 = vadd.f32 %v520, %v632
      %v635 = vadd.f32 %v521, %v633
      %s636 = sld [smem:[#allocation8 + $0x2]]
      %s637 = sld [smem:[#allocation8 + $0x33]]
      %v638 = vstv %s636
      %v639 = vmul.f32 %v638, %v297
      %v640 = vmul.f32 %v638, %v296
      %v641 = vstv %s637
      %v642 = vmul.f32 %v641, %v325
      %v643 = vmul.f32 %v641, %v324
      %v644 = vadd.f32 %v639, %v642
      %v645 = vadd.f32 %v640, %v643
      %s646 = sld [smem:[#allocation8 + $0x9]]
      %s647 = sld [smem:[#allocation8 + $0x3a]]
      %v648 = vstv %s646
      %v649 = vmul.f32 %v648, %v334
      %v650 = vmul.f32 %v648, %v333
      %v651 = vstv %s647
      %v652 = vmul.f32 %v651, %v342
      %v653 = vmul.f32 %v651, %v341
      %v654 = vadd.f32 %v649, %v652
      %v655 = vadd.f32 %v650, %v653
      %v656 = vadd.f32 %v644, %v654
      %v657 = vadd.f32 %v645, %v655
      %s658 = sld [smem:[#allocation8 + $0x10]]
      %s659 = sld [smem:[#allocation8 + $0x41]]
      %v660 = vstv %s658
      %v661 = vmul.f32 %v660, %v351
      %v662 = vmul.f32 %v660, %v350
      %v663 = vstv %s659
      %v664 = vmul.f32 %v663, %v359
      %v665 = vmul.f32 %v663, %v358
      %v666 = vadd.f32 %v661, %v664
      %v667 = vadd.f32 %v662, %v665
      %v668 = vadd.f32 %v656, %v666
      %v669 = vadd.f32 %v657, %v667
      %s670 = sld [smem:[#allocation8 + $0x17]]
      %s671 = sld [smem:[#allocation8 + $0x48]]
      %v672 = vstv %s670
      %v673 = vmul.f32 %v672, %v265
      %v674 = vstv %s671
      %v675 = vmul.f32 %v674, %v266
      %v676 = vadd.f32 %v673, %v675
      %v679 = vunpack.c.l.s4 1983009808
      %v680 = vunpack.c.0.s8 %v679
      %v681 = vlaneseq
      %v682 = vshrl.u32 %v681, 7
      %v683 = vsub.s32 %v680, %v682
      %v684 = vrot.slane %v676, %v683
      %v685 = vcombine.high %v684, %v684
      %v688 = vadd.f32 %v668, %v684
      %v689 = vadd.f32 %v669, %v685
      %s690 = sld [smem:[#allocation8 + $0x1e]]
      %s691 = sld [smem:[#allocation8 + $0x4f]]
      %v692 = vstv %s690
      %v693 = vmul.f32 %v692, %v368
      %v694 = vmul.f32 %v692, %v367
      %v695 = vstv %s691
      %v696 = vmul.f32 %v695, %v376
      %v697 = vmul.f32 %v695, %v375
      %v698 = vadd.f32 %v693, %v696
      %v699 = vadd.f32 %v694, %v697
      %v700 = vadd.f32 %v688, %v698
      %v701 = vadd.f32 %v689, %v699
      %s702 = sld [smem:[#allocation8 + $0x25]]
      %s703 = sld [smem:[#allocation8 + $0x56]]
      %v704 = vstv %s702
      %v705 = vmul.f32 %v704, %v385
      %v706 = vmul.f32 %v704, %v384
      %v707 = vstv %s703
      %v708 = vmul.f32 %v707, %v393
      %v709 = vmul.f32 %v707, %v392
      %v710 = vadd.f32 %v705, %v708
      %v711 = vadd.f32 %v706, %v709
      %v712 = vadd.f32 %v700, %v710
      %v713 = vadd.f32 %v701, %v711
      %s714 = sld [smem:[#allocation8 + $0x2c]]
      %s715 = sld [smem:[#allocation8 + $0x5d]]
      %v716 = vstv %s714
      %v717 = vmul.f32 %v716, %v402
      %v718 = vmul.f32 %v716, %v401
      %v719 = vstv %s715
      %v720 = vmul.f32 %v719, %v410
      %v721 = vmul.f32 %v719, %v409
      %v722 = vadd.f32 %v717, %v720
      %v723 = vadd.f32 %v718, %v721
      %v724 = vadd.f32 %v712, %v722
      %v725 = vadd.f32 %v713, %v723
      %726 = vrot.lane.b32.xlu0 %v724, 1
      %v727 = vpop.permute.xlu0 %726
      %728 = vrot.lane.b32.xlu0 %v725, 1
      %v729 = vpop.permute.xlu0 %728
      %vm730 = vcmp.lt.s32.totalorder %v294, 1
      %v731 = vsel %vm730, %v727, %v729
      %v732 = vsel %vm730, %v729, %v727
      %s733 = scalar_lea.vmem [#allocation9], 2
      %v734 = vld [vmem:[%s733] ss:$8 sm:$0x3]
      %v736 = vlaneseq
      %v737 = vshrl.u32 %v736, 7
      %v738 = vsub.s32 0, %v737
      %v739 = vrot.slane %v734, %v738
      %v740 = vlaneseq
      %v741 = vshrl.u32 %v740, 7
      %v742 = vsub.s32 1, %v741
      %v743 = vrot.slane %v734, %v742
      %v746 = vmul.f32 %v732, %v739
      %v747 = vmul.f32 %v731, %v743
      %v748 = vadd.f32 %v634, %v746
      %v749 = vadd.f32 %v635, %v747
      %s750 = sld [smem:[#allocation8 + $0x3]]
      %s751 = sld [smem:[#allocation8 + $0x34]]
      %v752 = vstv %s750
      %v753 = vmul.f32 %v752, %v297
      %v754 = vmul.f32 %v752, %v296
      %v755 = vstv %s751
      %v756 = vmul.f32 %v755, %v325
      %v757 = vmul.f32 %v755, %v324
      %v758 = vadd.f32 %v753, %v756
      %v759 = vadd.f32 %v754, %v757
      %s760 = sld [smem:[#allocation8 + $0xa]]
      %s761 = sld [smem:[#allocation8 + $0x3b]]
      %v762 = vstv %s760
      %v763 = vmul.f32 %v762, %v334
      %v764 = vmul.f32 %v762, %v333
      %v765 = vstv %s761
      %v766 = vmul.f32 %v765, %v342
      %v767 = vmul.f32 %v765, %v341
      %v768 = vadd.f32 %v763, %v766
      %v769 = vadd.f32 %v764, %v767
      %v770 = vadd.f32 %v758, %v768
      %v771 = vadd.f32 %v759, %v769
      %s772 = sld [smem:[#allocation8 + $0x11]]
      %s773 = sld [smem:[#allocation8 + $0x42]]
      %v774 = vstv %s772
      %v775 = vmul.f32 %v774, %v351
      %v776 = vmul.f32 %v774, %v350
      %v777 = vstv %s773
      %v778 = vmul.f32 %v777, %v359
      %v779 = vmul.f32 %v777, %v358
      %v780 = vadd.f32 %v775, %v778
      %v781 = vadd.f32 %v776, %v779
      %v782 = vadd.f32 %v770, %v780
      %v783 = vadd.f32 %v771, %v781
      %s784 = sld [smem:[#allocation8 + $0x18]]
      %s785 = sld [smem:[#allocation8 + $0x49]]
      %v786 = vstv %s784
      %v787 = vmul.f32 %v786, %v265
      %v788 = vstv %s785
      %v789 = vmul.f32 %v788, %v266
      %v790 = vadd.f32 %v787, %v789
      %v793 = vunpack.c.l.s4 1983009808
      %v794 = vunpack.c.0.s8 %v793
      %v795 = vlaneseq
      %v796 = vshrl.u32 %v795, 7
      %v797 = vsub.s32 %v794, %v796
      %v798 = vrot.slane %v790, %v797
      %v799 = vcombine.high %v798, %v798
      %v802 = vadd.f32 %v782, %v798
      %v803 = vadd.f32 %v783, %v799
      %s804 = sld [smem:[#allocation8 + $0x1f]]
      %s805 = sld [smem:[#allocation8 + $0x50]]
      %v806 = vstv %s804
      %v807 = vmul.f32 %v806, %v368
      %v808 = vmul.f32 %v806, %v367
      %v809 = vstv %s805
      %v810 = vmul.f32 %v809, %v376
      %v811 = vmul.f32 %v809, %v375
      %v812 = vadd.f32 %v807, %v810
      %v813 = vadd.f32 %v808, %v811
      %v814 = vadd.f32 %v802, %v812
      %v815 = vadd.f32 %v803, %v813
      %s816 = sld [smem:[#allocation8 + $0x26]]
      %s817 = sld [smem:[#allocation8 + $0x57]]
      %v818 = vstv %s816
      %v819 = vmul.f32 %v818, %v385
      %v820 = vmul.f32 %v818, %v384
      %v821 = vstv %s817
      %v822 = vmul.f32 %v821, %v393
      %v823 = vmul.f32 %v821, %v392
      %v824 = vadd.f32 %v819, %v822
      %v825 = vadd.f32 %v820, %v823
      %v826 = vadd.f32 %v814, %v824
      %v827 = vadd.f32 %v815, %v825
      %s828 = sld [smem:[#allocation8 + $0x2d]]
      %s829 = sld [smem:[#allocation8 + $0x5e]]
      %v830 = vstv %s828
      %v831 = vmul.f32 %v830, %v402
      %v832 = vmul.f32 %v830, %v401
      %v833 = vstv %s829
      %v834 = vmul.f32 %v833, %v410
      %v835 = vmul.f32 %v833, %v409
      %v836 = vadd.f32 %v831, %v834
      %v837 = vadd.f32 %v832, %v835
      %v838 = vadd.f32 %v826, %v836
      %v839 = vadd.f32 %v827, %v837
      %v840 = vadd.f32 %v748, %v838
      %v841 = vadd.f32 %v749, %v839
      %s842 = sld [smem:[#allocation8 + $0x4]]
      %s843 = sld [smem:[#allocation8 + $0x35]]
      %v844 = vstv %s842
      %v845 = vmul.f32 %v844, %v297
      %v846 = vmul.f32 %v844, %v296
      %v847 = vstv %s843
      %v848 = vmul.f32 %v847, %v325
      %v849 = vmul.f32 %v847, %v324
      %v850 = vadd.f32 %v845, %v848
      %v851 = vadd.f32 %v846, %v849
      %s852 = sld [smem:[#allocation8 + $0xb]]
      %s853 = sld [smem:[#allocation8 + $0x3c]]
      %v854 = vstv %s852
      %v855 = vmul.f32 %v854, %v334
      %v856 = vmul.f32 %v854, %v333
      %v857 = vstv %s853
      %v858 = vmul.f32 %v857, %v342
      %v859 = vmul.f32 %v857, %v341
      %v860 = vadd.f32 %v855, %v858
      %v861 = vadd.f32 %v856, %v859
      %v862 = vadd.f32 %v850, %v860
      %v863 = vadd.f32 %v851, %v861
      %s864 = sld [smem:[#allocation8 + $0x12]]
      %s865 = sld [smem:[#allocation8 + $0x43]]
      %v866 = vstv %s864
      %v867 = vmul.f32 %v866, %v351
      %v868 = vmul.f32 %v866, %v350
      %v869 = vstv %s865
      %v870 = vmul.f32 %v869, %v359
      %v871 = vmul.f32 %v869, %v358
      %v872 = vadd.f32 %v867, %v870
      %v873 = vadd.f32 %v868, %v871
      %v874 = vadd.f32 %v862, %v872
      %v875 = vadd.f32 %v863, %v873
      %s876 = sld [smem:[#allocation8 + $0x19]]
      %s877 = sld [smem:[#allocation8 + $0x4a]]
      %v878 = vstv %s876
      %v879 = vmul.f32 %v878, %v265
      %v880 = vstv %s877
      %v881 = vmul.f32 %v880, %v266
      %v882 = vadd.f32 %v879, %v881
      %v885 = vunpack.c.l.s4 1983009808
      %v886 = vunpack.c.0.s8 %v885
      %v887 = vlaneseq
      %v888 = vshrl.u32 %v887, 7
      %v889 = vsub.s32 %v886, %v888
      %v890 = vrot.slane %v882, %v889
      %v891 = vcombine.high %v890, %v890
      %v894 = vadd.f32 %v874, %v890
      %v895 = vadd.f32 %v875, %v891
      %s896 = sld [smem:[#allocation8 + $0x20]]
      %s897 = sld [smem:[#allocation8 + $0x51]]
      %v898 = vstv %s896
      %v899 = vmul.f32 %v898, %v368
      %v900 = vmul.f32 %v898, %v367
      %v901 = vstv %s897
      %v902 = vmul.f32 %v901, %v376
      %v903 = vmul.f32 %v901, %v375
      %v904 = vadd.f32 %v899, %v902
      %v905 = vadd.f32 %v900, %v903
      %v906 = vadd.f32 %v894, %v904
      %v907 = vadd.f32 %v895, %v905
      %s908 = sld [smem:[#allocation8 + $0x27]]
      %s909 = sld [smem:[#allocation8 + $0x58]]
      %v910 = vstv %s908
      %v911 = vmul.f32 %v910, %v385
      %v912 = vmul.f32 %v910, %v384
      %v913 = vstv %s909
      %v914 = vmul.f32 %v913, %v393
      %v915 = vmul.f32 %v913, %v392
      %v916 = vadd.f32 %v911, %v914
      %v917 = vadd.f32 %v912, %v915
      %v918 = vadd.f32 %v906, %v916
      %v919 = vadd.f32 %v907, %v917
      %s920 = sld [smem:[#allocation8 + $0x2e]]
      %s921 = sld [smem:[#allocation8 + $0x5f]]
      %v922 = vstv %s920
      %v923 = vmul.f32 %v922, %v402
      %v924 = vmul.f32 %v922, %v401
      %v925 = vstv %s921
      %v926 = vmul.f32 %v925, %v410
      %v927 = vmul.f32 %v925, %v409
      %v928 = vadd.f32 %v923, %v926
      %v929 = vadd.f32 %v924, %v927
      %v930 = vadd.f32 %v918, %v928
      %v931 = vadd.f32 %v919, %v929
      %932 = vrot.lane.b32.xlu0 %v930, 127
      %v933 = vpop.permute.xlu0 %932
      %934 = vrot.lane.b32.xlu0 %v931, 127
      %v935 = vpop.permute.xlu0 %934
      %vm936 = vcmp.lt.s32.totalorder %v294, 127
      %v937 = vsel %vm936, %v933, %v935
      %v938 = vsel %vm936, %v935, %v933
      %s939 = scalar_lea.vmem [#allocation9], 4
      %v940 = vld [vmem:[%s939] ss:$8 sm:$0x3]
      %v942 = vlaneseq
      %v943 = vshrl.u32 %v942, 7
      %v944 = vsub.s32 0, %v943
      %v945 = vrot.slane %v940, %v944
      %v946 = vlaneseq
      %v947 = vshrl.u32 %v946, 7
      %v948 = vsub.s32 1, %v947
      %v949 = vrot.slane %v940, %v948
      %v952 = vmul.f32 %v937, %v945
      %v953 = vmul.f32 %v938, %v949
      %v954 = vadd.f32 %v840, %v952
      %v955 = vadd.f32 %v841, %v953
      %s956 = sld [smem:[#allocation8 + $0x5]]
      %s957 = sld [smem:[#allocation8 + $0x36]]
      %v958 = vstv %s956
      %v959 = vmul.f32 %v958, %v297
      %v960 = vmul.f32 %v958, %v296
      %v961 = vstv %s957
      %v962 = vmul.f32 %v961, %v325
      %v963 = vmul.f32 %v961, %v324
      %v964 = vadd.f32 %v959, %v962
      %v965 = vadd.f32 %v960, %v963
      %s966 = sld [smem:[#allocation8 + $0xc]]
      %s967 = sld [smem:[#allocation8 + $0x3d]]
      %v968 = vstv %s966
      %v969 = vmul.f32 %v968, %v334
      %v970 = vmul.f32 %v968, %v333
      %v971 = vstv %s967
      %v972 = vmul.f32 %v971, %v342
      %v973 = vmul.f32 %v971, %v341
      %v974 = vadd.f32 %v969, %v972
      %v975 = vadd.f32 %v970, %v973
      %v976 = vadd.f32 %v964, %v974
      %v977 = vadd.f32 %v965, %v975
      %s978 = sld [smem:[#allocation8 + $0x13]]
      %s979 = sld [smem:[#allocation8 + $0x44]]
      %v980 = vstv %s978
      %v981 = vmul.f32 %v980, %v351
      %v982 = vmul.f32 %v980, %v350
      %v983 = vstv %s979
      %v984 = vmul.f32 %v983, %v359
      %v985 = vmul.f32 %v983, %v358
      %v986 = vadd.f32 %v981, %v984
      %v987 = vadd.f32 %v982, %v985
      %v988 = vadd.f32 %v976, %v986
      %v989 = vadd.f32 %v977, %v987
      %s990 = sld [smem:[#allocation8 + $0x1a]]
      %s991 = sld [smem:[#allocation8 + $0x4b]]
      %v992 = vstv %s990
      %v993 = vmul.f32 %v992, %v265
      %v994 = vstv %s991
      %v995 = vmul.f32 %v994, %v266
      %v996 = vadd.f32 %v993, %v995
      %v999 = vunpack.c.l.s4 1983009808
      %v1000 = vunpack.c.0.s8 %v999
      %v1001 = vlaneseq
      %v1002 = vshrl.u32 %v1001, 7
      %v1003 = vsub.s32 %v1000, %v1002
      %v1004 = vrot.slane %v996, %v1003
      %v1005 = vcombine.high %v1004, %v1004
      %v1008 = vadd.f32 %v988, %v1004
      %v1009 = vadd.f32 %v989, %v1005
      %s1010 = sld [smem:[#allocation8 + $0x21]]
      %s1011 = sld [smem:[#allocation8 + $0x52]]
      %v1012 = vstv %s1010
      %v1013 = vmul.f32 %v1012, %v368
      %v1014 = vmul.f32 %v1012, %v367
      %v1015 = vstv %s1011
      %v1016 = vmul.f32 %v1015, %v376
      %v1017 = vmul.f32 %v1015, %v375
      %v1018 = vadd.f32 %v1013, %v1016
      %v1019 = vadd.f32 %v1014, %v1017
      %v1020 = vadd.f32 %v1008, %v1018
      %v1021 = vadd.f32 %v1009, %v1019
      %s1022 = sld [smem:[#allocation8 + $0x28]]
      %s1023 = sld [smem:[#allocation8 + $0x59]]
      %v1024 = vstv %s1022
      %v1025 = vmul.f32 %v1024, %v385
      %v1026 = vmul.f32 %v1024, %v384
      %v1027 = vstv %s1023
      %v1028 = vmul.f32 %v1027, %v393
      %v1029 = vmul.f32 %v1027, %v392
      %v1030 = vadd.f32 %v1025, %v1028
      %v1031 = vadd.f32 %v1026, %v1029
      %v1032 = vadd.f32 %v1020, %v1030
      %v1033 = vadd.f32 %v1021, %v1031
      %s1034 = sld [smem:[#allocation8 + $0x2f]]
      %s1035 = sld [smem:[#allocation8 + $0x60]]
      %v1036 = vstv %s1034
      %v1037 = vmul.f32 %v1036, %v402
      %v1038 = vmul.f32 %v1036, %v401
      %v1039 = vstv %s1035
      %v1040 = vmul.f32 %v1039, %v410
      %v1041 = vmul.f32 %v1039, %v409
      %v1042 = vadd.f32 %v1037, %v1040
      %v1043 = vadd.f32 %v1038, %v1041
      %v1044 = vadd.f32 %v1032, %v1042
      %v1045 = vadd.f32 %v1033, %v1043
      %1046 = vrot.lane.b32.xlu0 %v1044, 126
      %v1047 = vpop.permute.xlu0 %1046
      %1048 = vrot.lane.b32.xlu0 %v1045, 126
      %v1049 = vpop.permute.xlu0 %1048
      %vm1050 = vcmp.lt.s32.totalorder %v294, 126
      %v1051 = vsel %vm1050, %v1047, %v1049
      %v1052 = vsel %vm1050, %v1049, %v1047
      %s1053 = scalar_lea.vmem [#allocation9], 5
      %v1054 = vld [vmem:[%s1053] ss:$8 sm:$0x3]
      %v1056 = vlaneseq
      %v1057 = vshrl.u32 %v1056, 7
      %v1058 = vsub.s32 0, %v1057
      %v1059 = vrot.slane %v1054, %v1058
      %v1060 = vlaneseq
      %v1061 = vshrl.u32 %v1060, 7
      %v1062 = vsub.s32 1, %v1061
      %v1063 = vrot.slane %v1054, %v1062
      %v1066 = vmul.f32 %v1051, %v1059
      %v1067 = vmul.f32 %v1052, %v1063
      %v1068 = vadd.f32 %v954, %v1066
      %v1069 = vadd.f32 %v955, %v1067
      %s1070 = sld [smem:[#allocation8 + $0x6]]
      %s1071 = sld [smem:[#allocation8 + $0x37]]
      %v1072 = vstv %s1070
      %v1073 = vmul.f32 %v1072, %v297
      %v1074 = vmul.f32 %v1072, %v296
      %v1075 = vstv %s1071
      %v1076 = vmul.f32 %v1075, %v325
      %v1077 = vmul.f32 %v1075, %v324
      %v1078 = vadd.f32 %v1073, %v1076
      %v1079 = vadd.f32 %v1074, %v1077
      %s1080 = sld [smem:[#allocation8 + $0xd]]
      %s1081 = sld [smem:[#allocation8 + $0x3e]]
      %v1082 = vstv %s1080
      %v1083 = vmul.f32 %v1082, %v334
      %v1084 = vmul.f32 %v1082, %v333
      %v1085 = vstv %s1081
      %v1086 = vmul.f32 %v1085, %v342
      %v1087 = vmul.f32 %v1085, %v341
      %v1088 = vadd.f32 %v1083, %v1086
      %v1089 = vadd.f32 %v1084, %v1087
      %v1090 = vadd.f32 %v1078, %v1088
      %v1091 = vadd.f32 %v1079, %v1089
      %s1092 = sld [smem:[#allocation8 + $0x14]]
      %s1093 = sld [smem:[#allocation8 + $0x45]]
      %v1094 = vstv %s1092
      %v1095 = vmul.f32 %v1094, %v351
      %v1096 = vmul.f32 %v1094, %v350
      %v1097 = vstv %s1093
      %v1098 = vmul.f32 %v1097, %v359
      %v1099 = vmul.f32 %v1097, %v358
      %v1100 = vadd.f32 %v1095, %v1098
      %v1101 = vadd.f32 %v1096, %v1099
      %v1102 = vadd.f32 %v1090, %v1100
      %v1103 = vadd.f32 %v1091, %v1101
      %s1104 = sld [smem:[#allocation8 + $0x1b]]
      %s1105 = sld [smem:[#allocation8 + $0x4c]]
      %v1106 = vstv %s1104
      %v1107 = vmul.f32 %v1106, %v265
      %v1108 = vstv %s1105
      %v1109 = vmul.f32 %v1108, %v266
      %v1110 = vadd.f32 %v1107, %v1109
      %v1113 = vunpack.c.l.s4 1983009808
      %v1114 = vunpack.c.0.s8 %v1113
      %v1115 = vlaneseq
      %v1116 = vshrl.u32 %v1115, 7
      %v1117 = vsub.s32 %v1114, %v1116
      %v1118 = vrot.slane %v1110, %v1117
      %v1119 = vcombine.high %v1118, %v1118
      %v1122 = vadd.f32 %v1102, %v1118
      %v1123 = vadd.f32 %v1103, %v1119
      %s1124 = sld [smem:[#allocation8 + $0x22]]
      %s1125 = sld [smem:[#allocation8 + $0x53]]
      %v1126 = vstv %s1124
      %v1127 = vmul.f32 %v1126, %v368
      %v1128 = vmul.f32 %v1126, %v367
      %v1129 = vstv %s1125
      %v1130 = vmul.f32 %v1129, %v376
      %v1131 = vmul.f32 %v1129, %v375
      %v1132 = vadd.f32 %v1127, %v1130
      %v1133 = vadd.f32 %v1128, %v1131
      %v1134 = vadd.f32 %v1122, %v1132
      %v1135 = vadd.f32 %v1123, %v1133
      %s1136 = sld [smem:[#allocation8 + $0x29]]
      %s1137 = sld [smem:[#allocation8 + $0x5a]]
      %v1138 = vstv %s1136
      %v1139 = vmul.f32 %v1138, %v385
      %v1140 = vmul.f32 %v1138, %v384
      %v1141 = vstv %s1137
      %v1142 = vmul.f32 %v1141, %v393
      %v1143 = vmul.f32 %v1141, %v392
      %v1144 = vadd.f32 %v1139, %v1142
      %v1145 = vadd.f32 %v1140, %v1143
      %v1146 = vadd.f32 %v1134, %v1144
      %v1147 = vadd.f32 %v1135, %v1145
      %s1148 = sld [smem:[#allocation8 + $0x30]]
      %s1149 = sld [smem:[#allocation8 + $0x61]]
      %v1150 = vstv %s1148
      %v1151 = vmul.f32 %v1150, %v402
      %v1152 = vmul.f32 %v1150, %v401
      %v1153 = vstv %s1149
      %v1154 = vmul.f32 %v1153, %v410
      %v1155 = vmul.f32 %v1153, %v409
      %v1156 = vadd.f32 %v1151, %v1154
      %v1157 = vadd.f32 %v1152, %v1155
      %v1158 = vadd.f32 %v1146, %v1156
      %v1159 = vadd.f32 %v1147, %v1157
      %1160 = vrot.lane.b32.xlu0 %v1158, 125
      %v1161 = vpop.permute.xlu0 %1160
      %1162 = vrot.lane.b32.xlu0 %v1159, 125
      %v1163 = vpop.permute.xlu0 %1162
      %vm1164 = vcmp.lt.s32.totalorder %v294, 125
      %v1165 = vsel %vm1164, %v1161, %v1163
      %v1166 = vsel %vm1164, %v1163, %v1161
      %s1167 = scalar_lea.vmem [#allocation9], 6
      %v1168 = vld [vmem:[%s1167] ss:$8 sm:$0x3]
      %v1170 = vlaneseq
      %v1171 = vshrl.u32 %v1170, 7
      %v1172 = vsub.s32 0, %v1171
      %v1173 = vrot.slane %v1168, %v1172
      %v1174 = vlaneseq
      %v1175 = vshrl.u32 %v1174, 7
      %v1176 = vsub.s32 1, %v1175
      %v1177 = vrot.slane %v1168, %v1176
      %v1180 = vmul.f32 %v1165, %v1173
      %v1181 = vmul.f32 %v1166, %v1177
      %v1182 = vadd.f32 %v1068, %v1180
      %v1183 = vadd.f32 %v1069, %v1181
      %v1184 = vxor.u32 %v1182, 2147483648
      %v1185 = vxor.u32 %v1183, 2147483648
      %v1186 = vmul.f32 %v1184, 1.442695
      %v1187 = vpow.pop %v1186
      %v1188 = vmul.f32 %v1185, 1.442695
      %v1189 = vpow.pop %v1188
      %v1190 = vadd.f32 %v1187, 1.0
      %v1191 = vadd.f32 %v1189, 1.0
      %v1192 = vrcp.pop %v1190
      %v1193 = vmul.f32 1.0, %v1192
      %v1194 = vrcp.pop %v1191
      %v1195 = vmul.f32 1.0, %v1194
      %v1198 = vcombine.low %v1193, %v1195
      %v1200 = vunpack.c.l.s4 1983009808
      %v1201 = vunpack.c.0.s8 %v1200
      %v1202 = vlaneseq
      %v1203 = vshrl.u32 %v1202, 7
      %v1204 = vsub.s32 %v1201, %v1203
      %v1205 = vrot.slane %v1198, %v1204
      %1207 = vst [vmem:[#allocation11] sm:$0xf] %v1205
    $region37: #{tpu_custom_call.1} parent=1 // pred_fallthru
      _
    // Predicated region
    $region38: #{tpu_custom_call.1} parent=1 // pred_check
      _
    $region39: #{tpu_custom_call.1} parent=1 // pred_check_branch
      %1209 = sbr.rel (0) target = $region41
    $region40: #{tpu_custom_call.1} parent=1 // pred_region
      %s1211 = ssub.s32 64, 64
      %1212 = vsyncadd [#allocation6], %s1211
      %s1214 = sshll.u32 [#allocation11], 4
      %s1215 = int_to_ptr.vmem [resolvable:$true] %s1214
      %1217 = dma.vmem_to_hbm [thread:$0]  %s1215, 64, %s3, [#allocation6]
    $region41: #{tpu_custom_call.1} parent=1 // pred_fallthru
      _
    // Predicated region
    $region42: #{tpu_custom_call.1} parent=1 // pred_check
      _
    $region43: #{tpu_custom_call.1} parent=1 // pred_check_branch
      %1219 = sbr.rel (0) target = $region45
    $region44: #{tpu_custom_call.1} parent=1 // pred_region
      %1220 = dma.done [#allocation6], 64
    $region45: #{tpu_custom_call.1} parent=1 // pred_fallthru
      _
    %1221 = vsyncpa [#allocation5], 1
    %1222 = vsyncpa [#allocation10], 1
    %1223 = vsyncpa [#allocation6], 1
    %1224 = vsyncpa [#allocation7], 1

</llo_original>
